<compile_context>
chip_gen: v6e
topology: v6e:2x2x1
jax: 0.10.0
libtpu: 0.0.40
codegen_flags: <defaults>
</compile_context>

<pallas_src>
import functools

import jax
import jax.numpy as jnp
from jax import lax
from jax.experimental import pallas as pl
from jax.experimental.pallas import tpu as pltpu

LEAKY_SLOPE = 0.01  # PyTorch nn.LeakyReLU default


def _round_up(x, m):
    return (x + m - 1) // m * m


# ----------------------------------------------------------------------------
# In-kernel 3x3 conv: im2col via lane-roll + precomputed mask-mul, split-K MXU
# ----------------------------------------------------------------------------
def _conv3x3(x, w_ref, b_ref, mask_ref, li, cin, cout, leaky, *, W, NHW):
    """3x3 conv, stride 1, zero-pad 1, channels-first, batch folded into lanes.

    x        : (cin, NHW)  f32  activations (n*H*W flattened on the lane axis)
    w_ref    : (3*n_conv, cout_max, k_lane) bf16 packed weights; row li*3+kh holds the
               kh tap-row in (kw, ci) order in its first 3*cin lanes
    b_ref    : (n_conv, cout_max, 1) f32 packed biases
    mask_ref : (8, NHW) f32 validity masks for the 8 non-center taps (kh, kw order)
    returns  : (cout, NHW) f32
    """
    acc = None
    t = 0                                               # mask row for non-center taps
    for kh in range(3):
        dh = kh - 1
        chunk = []
        for kw in range(3):
            dw = kw - 1
            if dh == 0 and dw == 0:
                chunk.append(x.astype(jnp.bfloat16))
                continue
            # shifted[i] = x[(i + dh*W + dw) mod NHW]; out-of-image taps zeroed by the
            # precomputed mask (valid taps never cross image boundaries on the folded
            # lane axis, so the mod-NHW wrap is always masked out).
            shifted = pltpu.roll(x, shift=(-(dh * W + dw)) % NHW, axis=1)
            chunk.append((shifted * mask_ref[t:t + 1, :]).astype(jnp.bfloat16))
            t += 1
        col = jnp.concatenate(chunk, axis=0)            # (3*cin, NHW) bf16, 8-aligned
        w_kh = w_ref[li * 3 + kh, :cout, :3 * cin]      # (cout, 3*cin) bf16
        part = jnp.dot(w_kh, col, preferred_element_type=jnp.float32)
        acc = part if acc is None else acc + part       # f32 accumulate across kh
    acc = acc + b_ref[li, :cout, :]
    if leaky:
        acc = jnp.maximum(acc, LEAKY_SLOPE * acc)       # mul+max, cheaper than cmp+sel
    return acc


# ----------------------------------------------------------------------------
# Fused kernel: the whole routed layer graph, all activations live in VMEM/vregs
# ----------------------------------------------------------------------------
def fused_parsable_kernel(x_ref, w_ref, b_ref, mask_ref, o_ref, *,
                          layers_meta, N, HW, W):
    NHW = N * HW
    # Mirrors TorchParsableModel.forward: routed layer loop with saved outputs `y`.
    x = x_ref[...]                                      # (cin0_pad, NHW) f32
    y = []
    li = 0
    for meta in layers_meta:
        f = meta["from_layer"]
        if not (isinstance(f, int) and f == -1):        # `from_layer != -1` routing
            x = y[f] if isinstance(f, int) else [x if j == -1 else y[j] for j in f]
        if meta["type"] == "conv":
            x = _conv3x3(x, w_ref, b_ref, mask_ref, li, meta["cin"], meta["cout"],
                         meta["leaky"], W=W, NHW=NHW)
            li += 1
        elif meta["type"] == "concat":
            x = jnp.concatenate(x, axis=0)              # channel concat (8-aligned)
        y.append(x)
    # Lane-dense per-image stores (each slice starts at a 128-aligned lane offset).
    for n in range(N):
        o_ref[n] = x[:, n * HW:(n + 1) * HW].astype(o_ref.dtype)


# ----------------------------------------------------------------------------
# Wrapper: one pallas_call for the whole forward pass
# ----------------------------------------------------------------------------
def parsable_forward(x_nchw, layers):
    """Mirrors TorchParsableModel.forward, fused into a single pallas_call."""
    N, cin0, H, W = x_nchw.shape
    HW = H * W
    NHW = N * HW
    cin0_pad = _round_up(cin0, 8)                       # 8-sublane-aligned input chans

    # --- trace channel counts through the routing; collect static metadata ----------
    layers_meta, ch = [], []
    conv_ws, conv_bs = [], []
    c = cin0_pad
    for layer in layers:
        f = layer["from_layer"]
        src = c
        if not (isinstance(f, int) and f == -1):
            src = ch[f] if isinstance(f, int) else [c if j == -1 else ch[j] for j in f]
        if layer["type"] == "conv":
            w, b = layer["w"], layer["b"]
            cout, cin = w.shape[0], src
            if w.shape[1] < cin:                        # zero-cols for padded input
                w = jnp.pad(w, ((0, 0), (0, cin - w.shape[1]), (0, 0), (0, 0)))
            conv_ws.append(w)
            conv_bs.append(b)
            layers_meta.append({"type": "conv", "from_layer": f, "cin": cin,
                                "cout": cout, "leaky": layer["leaky"]})
            c = cout
        else:
            layers_meta.append({"type": layer["type"], "from_layer": f})
            c = sum(src)
        ch.append(c)
    cout_final = c
    n_conv = len(conv_ws)

    cout_max = _round_up(max(w.shape[0] for w in conv_ws), 8)
    k_lane = _round_up(max(3 * w.shape[1] for w in conv_ws), 128)

    # --- pack ALL conv weights into one bf16 buffer, ALL biases into one f32 buffer --
    # Row li*3+kh holds the kh tap-row in (kw, ci) order, zero-padded to k_lane lanes.
    w_blocks, b_blocks = [], []
    for w, b in zip(conv_ws, conv_bs):
        cout, cin = w.shape[0], w.shape[1]
        w_t = jnp.transpose(w, (0, 2, 3, 1))            # (cout, kh, kw, cin)
        for kh in range(3):
            wk = w_t[:, kh].reshape(cout, 3 * cin)
            w_blocks.append(jnp.pad(wk, ((0, cout_max - cout), (0, k_lane - 3 * cin))))
        b_blocks.append(jnp.pad(b.reshape(cout, 1), ((0, cout_max - cout), (0, 0))))
    w_all = jnp.stack(w_blocks).astype(jnp.bfloat16)    # (3*n_conv, cout_max, k_lane)
    b_all = jnp.stack(b_blocks).astype(jnp.float32)     # (n_conv, cout_max, 1)

    # --- precompute the 8 static zero-padding validity masks (shared by all convs) ---
    pos = jnp.arange(NHW, dtype=jnp.int32) % HW
    h_idx, w_idx = pos // W, pos % W
    rows = []
    for kh in range(3):
        for kw in range(3):
            if kh == 1 and kw == 1:
                continue
            dh, dw = kh - 1, kw - 1
            valid = ((h_idx + dh >= 0) & (h_idx + dh < H) &
                     (w_idx + dw >= 0) & (w_idx + dw < W))
            rows.append(valid.astype(jnp.float32))
    masks = jnp.stack(rows)                             # (8, NHW)

    # --- batch folded onto the 128-wide lane axis: (cin, N*H*W), 8-aligned channels --
    x_pad = jnp.pad(x_nchw, ((0, 0), (0, cin0_pad - cin0), (0, 0), (0, 0)))
    x_cf = jnp.transpose(x_pad, (1, 0, 2, 3)).reshape(cin0_pad, NHW)

    kernel = functools.partial(fused_parsable_kernel, layers_meta=layers_meta,
                               N=N, HW=HW, W=W)

    flops = sum(2 * m["cout"] * 9 * m["cin"] * NHW
                for m in layers_meta if m["type"] == "conv")
    bytes_accessed = (x_cf.size * 4 + w_all.size * 2 + b_all.size * 4 +
                      masks.size * 4 + N * cout_final * HW * 4)

    out = pl.pallas_call(
        kernel,
        out_shape=jax.ShapeDtypeStruct((N, cout_final, HW), jnp.float32),
        grid=(1,),                                      # whole batch in one invocation
        in_specs=[pl.BlockSpec(x_cf.shape, lambda i: (0, 0)),
                  pl.BlockSpec(w_all.shape, lambda i: (0, 0, 0)),
                  pl.BlockSpec(b_all.shape, lambda i: (0, 0, 0)),
                  pl.BlockSpec(masks.shape, lambda i: (0, 0))],
        out_specs=pl.BlockSpec((N, cout_final, HW), lambda i: (0, 0, 0)),
        compiler_params=pltpu.CompilerParams(dimension_semantics=("arbitrary",)),
        cost_estimate=pl.CostEstimate(flops=flops, transcendentals=0,
                                      bytes_accessed=bytes_accessed),
    )(x_cf, w_all, b_all, masks)
    return out.reshape(N, cout_final, H, W)             # NCHW-flat -> free reshape


# ----------------------------------------------------------------------------
# Synthetic "parsed" model (replaces YAML config + parse_model)
# ----------------------------------------------------------------------------
# TODO(synk): YAML config parsing / logger plumbing from __init__ has no Pallas
# equivalent; replaced with this deterministic in-script layer list.
def build_model(key, cin=3):
    def conv_params(key, cin, cout):
        kw, kb = jax.random.split(key)
        w = 0.1 * jax.random.normal(kw, (cout, cin, 3, 3), jnp.float32)  # PyTorch OIHW
        b = 0.01 * jax.random.normal(kb, (cout,), jnp.float32)
        return w, b

    k0, k1, k3 = jax.random.split(key, 3)
    w0, b0 = conv_params(k0, cin, 8)        # layer 0: Conv 3 -> 8, LeakyReLU
    w1, b1 = conv_params(k1, 8, 8)          # layer 1: Conv 8 -> 8, LeakyReLU
    #                                         layer 2: Concat([-1, 0]) -> 16 channels
    w3, b3 = conv_params(k3, 16, 8)         # layer 3: Conv 16 -> 8, linear

    return [
        {"type": "conv",   "from_layer": -1,      "w": w0, "b": b0, "leaky": True},
        {"type": "conv",   "from_layer": -1,      "w": w1, "b": b1, "leaky": True},
        {"type": "concat", "from_layer": [-1, 0]},
        {"type": "conv",   "from_layer": -1,      "w": w3, "b": b3, "leaky": False},
    ]


def reference_forward(x, layers):
    """Pure-JAX f32 reference (same routing loop), for a numerical sanity check."""
    def conv(x, w, b, leaky):
        y = lax.conv_general_dilated(x, w, (1, 1), "SAME",
                                     dimension_numbers=("NCHW", "OIHW", "NCHW"))
        y = y + b.reshape(1, -1, 1, 1)
        return jnp.where(y > 0, y, LEAKY_SLOPE * y) if leaky else y

    out, y = x, []
    for layer in layers:
        f = layer["from_layer"]
        if not (isinstance(f, int) and f == -1):
            out = y[f] if isinstance(f, int) else [out if j == -1 else y[j] for j in f]
        if layer["type"] == "conv":
            out = conv(out, layer["w"], layer["b"], layer["leaky"])
        else:
            out = jnp.concatenate(out, axis=1)
        y.append(out)
    return out


if __name__ == "__main__":
    key = jax.random.PRNGKey(0)
    k_model, k_x = jax.random.split(key)

    layers = build_model(k_model, cin=3)

    # Input consistent with the conv-net forward: NCHW, batch=2, C=3, 16x16 spatial.
    x = jax.random.normal(k_x, (2, 3, 16, 16), jnp.float32)

    fwd = jax.jit(lambda xx: parsable_forward(xx, layers))
    out = jax.block_until_ready(fwd(x))

    assert out.shape == (2, 8, 16, 16), out.shape
    assert bool(jnp.all(jnp.isfinite(out)))

    # Numerical check vs the f32 reference (bf16 MXU operands -> loose tolerance).
    ref = reference_forward(x, layers)
    max_err = float(jnp.max(jnp.abs(out - ref)))
    assert max_err < 1e-1, max_err

    print("KERNEL_OK")
</pallas_src>

<mosaic_0001>
module attributes {stable_mosaic.version = 11 : i64} {
  func.func @fused_parsable_kernel(%arg0: i32, %arg1: memref<8x512xf32, #tpu.memory_space<vmem>>, %arg2: memref<9x8x128xbf16, #tpu.memory_space<vmem>>, %arg3: memref<3x8x1xf32, #tpu.memory_space<vmem>>, %arg4: memref<8x512xf32, #tpu.memory_space<vmem>>, %arg5: memref<2x8x256xf32, #tpu.memory_space<vmem>>) attributes {dimension_semantics = [#tpu.dimension_semantics<arbitrary>], iteration_bounds = array<i64: 1>, scalar_prefetch = 0 : i64, scratch_operands = 0 : i64, tpu.core_type = #tpu.core_type<tc>, window_params = [{pipeline_mode = #tpu.pipeline_mode<synchronous>, transform_indices = @transform_0, window_bounds = array<i64: 8, 512>}, {pipeline_mode = #tpu.pipeline_mode<synchronous>, transform_indices = @transform_1, window_bounds = array<i64: 9, 8, 128>}, {pipeline_mode = #tpu.pipeline_mode<synchronous>, transform_indices = @transform_2, window_bounds = array<i64: 3, 8, 1>}, {pipeline_mode = #tpu.pipeline_mode<synchronous>, transform_indices = @transform_3, window_bounds = array<i64: 8, 512>}, {pipeline_mode = #tpu.pipeline_mode<synchronous>, transform_indices = @transform_4, window_bounds = array<i64: 2, 8, 256>}]} {
    %c0 = arith.constant 0 : index
    %c0_0 = arith.constant 0 : index
    %0 = vector.load %arg1[%c0, %c0_0] : memref<8x512xf32, #tpu.memory_space<vmem>>, vector<8x512xf32>
    %c17_i32 = arith.constant 17 : i32
    %1 = tpu.dynamic_rotate %0 by %c17_i32 dim 1 : vector<8x512xf32>, i32 -> vector<8x512xf32>
    %c0_1 = arith.constant 0 : index
    %c0_2 = arith.constant 0 : index
    %2 = vector.load %arg4[%c0_1, %c0_2] : memref<8x512xf32, #tpu.memory_space<vmem>>, vector<1x512xf32>
    %3 = vector.broadcast %2 : vector<1x512xf32> to vector<8x512xf32>
    %4 = arith.mulf %1, %3 : vector<8x512xf32>
    %5 = arith.truncf %4 : vector<8x512xf32> to vector<8x512xbf16>
    %c16_i32 = arith.constant 16 : i32
    %6 = tpu.dynamic_rotate %0 by %c16_i32 dim 1 : vector<8x512xf32>, i32 -> vector<8x512xf32>
    %c1 = arith.constant 1 : index
    %c0_3 = arith.constant 0 : index
    %7 = vector.load %arg4[%c1, %c0_3] : memref<8x512xf32, #tpu.memory_space<vmem>>, vector<1x512xf32>
    %8 = vector.broadcast %7 : vector<1x512xf32> to vector<8x512xf32>
    %9 = arith.mulf %6, %8 : vector<8x512xf32>
    %10 = arith.truncf %9 : vector<8x512xf32> to vector<8x512xbf16>
    %c15_i32 = arith.constant 15 : i32
    %11 = tpu.dynamic_rotate %0 by %c15_i32 dim 1 : vector<8x512xf32>, i32 -> vector<8x512xf32>
    %c2 = arith.constant 2 : index
    %c0_4 = arith.constant 0 : index
    %12 = vector.load %arg4[%c2, %c0_4] : memref<8x512xf32, #tpu.memory_space<vmem>>, vector<1x512xf32>
    %13 = vector.broadcast %12 : vector<1x512xf32> to vector<8x512xf32>
    %14 = arith.mulf %11, %13 : vector<8x512xf32>
    %15 = arith.truncf %14 : vector<8x512xf32> to vector<8x512xbf16>
    %16 = tpu.concatenate %5, %10, %15 in 0 : vector<8x512xbf16>, vector<8x512xbf16>, vector<8x512xbf16> -> vector<24x512xbf16>
    %c0_5 = arith.constant 0 : index
    %c0_6 = arith.constant 0 : index
    %c0_7 = arith.constant 0 : index
    %17 = vector.load %arg2[%c0_5, %c0_6, %c0_7] : memref<9x8x128xbf16, #tpu.memory_space<vmem>>, vector<1x8x24xbf16>
    %18 = vector.shape_cast %17 : vector<1x8x24xbf16> to vector<8x24xbf16>
    %cst = arith.constant dense<0.000000e+00> : vector<8x512xf32>
    %19 = tpu.matmul %18, %16, %cst {dimension_numbers = #tpu.dot_dimension_numbers<[1], [0], [0], [1], [0, 0, 1, 1], [], []>} : vector<8x24xbf16>, vector<24x512xbf16>, vector<8x512xf32> -> vector<8x512xf32>
    %c1_i32 = arith.constant 1 : i32
    %20 = tpu.dynamic_rotate %0 by %c1_i32 dim 1 : vector<8x512xf32>, i32 -> vector<8x512xf32>
    %c3 = arith.constant 3 : index
    %c0_8 = arith.constant 0 : index
    %21 = vector.load %arg4[%c3, %c0_8] : memref<8x512xf32, #tpu.memory_space<vmem>>, vector<1x512xf32>
    %22 = vector.broadcast %21 : vector<1x512xf32> to vector<8x512xf32>
    %23 = arith.mulf %20, %22 : vector<8x512xf32>
    %24 = arith.truncf %23 : vector<8x512xf32> to vector<8x512xbf16>
    %25 = arith.truncf %0 : vector<8x512xf32> to vector<8x512xbf16>
    %c511_i32 = arith.constant 511 : i32
    %26 = tpu.dynamic_rotate %0 by %c511_i32 dim 1 : vector<8x512xf32>, i32 -> vector<8x512xf32>
    %c4 = arith.constant 4 : index
    %c0_9 = arith.constant 0 : index
    %27 = vector.load %arg4[%c4, %c0_9] : memref<8x512xf32, #tpu.memory_space<vmem>>, vector<1x512xf32>
    %28 = vector.broadcast %27 : vector<1x512xf32> to vector<8x512xf32>
    %29 = arith.mulf %26, %28 : vector<8x512xf32>
    %30 = arith.truncf %29 : vector<8x512xf32> to vector<8x512xbf16>
    %31 = tpu.concatenate %24, %25, %30 in 0 : vector<8x512xbf16>, vector<8x512xbf16>, vector<8x512xbf16> -> vector<24x512xbf16>
    %c1_10 = arith.constant 1 : index
    %c0_11 = arith.constant 0 : index
    %c0_12 = arith.constant 0 : index
    %32 = vector.load %arg2[%c1_10, %c0_11, %c0_12] : memref<9x8x128xbf16, #tpu.memory_space<vmem>>, vector<1x8x24xbf16>
    %33 = vector.shape_cast %32 : vector<1x8x24xbf16> to vector<8x24xbf16>
    %cst_13 = arith.constant dense<0.000000e+00> : vector<8x512xf32>
    %34 = tpu.matmul %33, %31, %cst_13 {dimension_numbers = #tpu.dot_dimension_numbers<[1], [0], [0], [1], [0, 0, 1, 1], [], []>} : vector<8x24xbf16>, vector<24x512xbf16>, vector<8x512xf32> -> vector<8x512xf32>
    %35 = arith.addf %19, %34 : vector<8x512xf32>
    %c497_i32 = arith.constant 497 : i32
    %36 = tpu.dynamic_rotate %0 by %c497_i32 dim 1 : vector<8x512xf32>, i32 -> vector<8x512xf32>
    %c5 = arith.constant 5 : index
    %c0_14 = arith.constant 0 : index
    %37 = vector.load %arg4[%c5, %c0_14] : memref<8x512xf32, #tpu.memory_space<vmem>>, vector<1x512xf32>
    %38 = vector.broadcast %37 : vector<1x512xf32> to vector<8x512xf32>
    %39 = arith.mulf %36, %38 : vector<8x512xf32>
    %40 = arith.truncf %39 : vector<8x512xf32> to vector<8x512xbf16>
    %c496_i32 = arith.constant 496 : i32
    %41 = tpu.dynamic_rotate %0 by %c496_i32 dim 1 : vector<8x512xf32>, i32 -> vector<8x512xf32>
    %c6 = arith.constant 6 : index
    %c0_15 = arith.constant 0 : index
    %42 = vector.load %arg4[%c6, %c0_15] : memref<8x512xf32, #tpu.memory_space<vmem>>, vector<1x512xf32>
    %43 = vector.broadcast %42 : vector<1x512xf32> to vector<8x512xf32>
    %44 = arith.mulf %41, %43 : vector<8x512xf32>
    %45 = arith.truncf %44 : vector<8x512xf32> to vector<8x512xbf16>
    %c495_i32 = arith.constant 495 : i32
    %46 = tpu.dynamic_rotate %0 by %c495_i32 dim 1 : vector<8x512xf32>, i32 -> vector<8x512xf32>
    %c7 = arith.constant 7 : index
    %c0_16 = arith.constant 0 : index
    %47 = vector.load %arg4[%c7, %c0_16] : memref<8x512xf32, #tpu.memory_space<vmem>>, vector<1x512xf32>
    %48 = vector.broadcast %47 : vector<1x512xf32> to vector<8x512xf32>
    %49 = arith.mulf %46, %48 : vector<8x512xf32>
    %50 = arith.truncf %49 : vector<8x512xf32> to vector<8x512xbf16>
    %51 = tpu.concatenate %40, %45, %50 in 0 : vector<8x512xbf16>, vector<8x512xbf16>, vector<8x512xbf16> -> vector<24x512xbf16>
    %c2_17 = arith.constant 2 : index
    %c0_18 = arith.constant 0 : index
    %c0_19 = arith.constant 0 : index
    %52 = vector.load %arg2[%c2_17, %c0_18, %c0_19] : memref<9x8x128xbf16, #tpu.memory_space<vmem>>, vector<1x8x24xbf16>
    %53 = vector.shape_cast %52 : vector<1x8x24xbf16> to vector<8x24xbf16>
    %cst_20 = arith.constant dense<0.000000e+00> : vector<8x512xf32>
    %54 = tpu.matmul %53, %51, %cst_20 {dimension_numbers = #tpu.dot_dimension_numbers<[1], [0], [0], [1], [0, 0, 1, 1], [], []>} : vector<8x24xbf16>, vector<24x512xbf16>, vector<8x512xf32> -> vector<8x512xf32>
    %55 = arith.addf %35, %54 : vector<8x512xf32>
    %c0_21 = arith.constant 0 : index
    %c0_22 = arith.constant 0 : index
    %c0_23 = arith.constant 0 : index
    %56 = vector.load %arg3[%c0_21, %c0_22, %c0_23] : memref<3x8x1xf32, #tpu.memory_space<vmem>>, vector<1x8x1xf32>
    %57 = vector.shape_cast %56 : vector<1x8x1xf32> to vector<8x1xf32>
    %58 = vector.broadcast %57 : vector<8x1xf32> to vector<8x512xf32>
    %59 = arith.addf %55, %58 : vector<8x512xf32>
    %cst_24 = arith.constant 0.00999999977 : f32
    %60 = vector.broadcast %cst_24 : f32 to vector<8x512xf32>
    %61 = arith.mulf %60, %59 : vector<8x512xf32>
    %62 = arith.maximumf %59, %61 : vector<8x512xf32>
    %c17_i32_25 = arith.constant 17 : i32
    %63 = tpu.dynamic_rotate %62 by %c17_i32_25 dim 1 : vector<8x512xf32>, i32 -> vector<8x512xf32>
    %c0_26 = arith.constant 0 : index
    %c0_27 = arith.constant 0 : index
    %64 = vector.load %arg4[%c0_26, %c0_27] : memref<8x512xf32, #tpu.memory_space<vmem>>, vector<1x512xf32>
    %65 = vector.broadcast %64 : vector<1x512xf32> to vector<8x512xf32>
    %66 = arith.mulf %63, %65 : vector<8x512xf32>
    %67 = arith.truncf %66 : vector<8x512xf32> to vector<8x512xbf16>
    %c16_i32_28 = arith.constant 16 : i32
    %68 = tpu.dynamic_rotate %62 by %c16_i32_28 dim 1 : vector<8x512xf32>, i32 -> vector<8x512xf32>
    %c1_29 = arith.constant 1 : index
    %c0_30 = arith.constant 0 : index
    %69 = vector.load %arg4[%c1_29, %c0_30] : memref<8x512xf32, #tpu.memory_space<vmem>>, vector<1x512xf32>
    %70 = vector.broadcast %69 : vector<1x512xf32> to vector<8x512xf32>
    %71 = arith.mulf %68, %70 : vector<8x512xf32>
    %72 = arith.truncf %71 : vector<8x512xf32> to vector<8x512xbf16>
    %c15_i32_31 = arith.constant 15 : i32
    %73 = tpu.dynamic_rotate %62 by %c15_i32_31 dim 1 : vector<8x512xf32>, i32 -> vector<8x512xf32>
    %c2_32 = arith.constant 2 : index
    %c0_33 = arith.constant 0 : index
    %74 = vector.load %arg4[%c2_32, %c0_33] : memref<8x512xf32, #tpu.memory_space<vmem>>, vector<1x512xf32>
    %75 = vector.broadcast %74 : vector<1x512xf32> to vector<8x512xf32>
    %76 = arith.mulf %73, %75 : vector<8x512xf32>
    %77 = arith.truncf %76 : vector<8x512xf32> to vector<8x512xbf16>
    %78 = tpu.concatenate %67, %72, %77 in 0 : vector<8x512xbf16>, vector<8x512xbf16>, vector<8x512xbf16> -> vector<24x512xbf16>
    %c3_34 = arith.constant 3 : index
    %c0_35 = arith.constant 0 : index
    %c0_36 = arith.constant 0 : index
    %79 = vector.load %arg2[%c3_34, %c0_35, %c0_36] : memref<9x8x128xbf16, #tpu.memory_space<vmem>>, vector<1x8x24xbf16>
    %80 = vector.shape_cast %79 : vector<1x8x24xbf16> to vector<8x24xbf16>
    %cst_37 = arith.constant dense<0.000000e+00> : vector<8x512xf32>
    %81 = tpu.matmul %80, %78, %cst_37 {dimension_numbers = #tpu.dot_dimension_numbers<[1], [0], [0], [1], [0, 0, 1, 1], [], []>} : vector<8x24xbf16>, vector<24x512xbf16>, vector<8x512xf32> -> vector<8x512xf32>
    %c1_i32_38 = arith.constant 1 : i32
    %82 = tpu.dynamic_rotate %62 by %c1_i32_38 dim 1 : vector<8x512xf32>, i32 -> vector<8x512xf32>
    %c3_39 = arith.constant 3 : index
    %c0_40 = arith.constant 0 : index
    %83 = vector.load %arg4[%c3_39, %c0_40] : memref<8x512xf32, #tpu.memory_space<vmem>>, vector<1x512xf32>
    %84 = vector.broadcast %83 : vector<1x512xf32> to vector<8x512xf32>
    %85 = arith.mulf %82, %84 : vector<8x512xf32>
    %86 = arith.truncf %85 : vector<8x512xf32> to vector<8x512xbf16>
    %87 = arith.truncf %62 : vector<8x512xf32> to vector<8x512xbf16>
    %c511_i32_41 = arith.constant 511 : i32
    %88 = tpu.dynamic_rotate %62 by %c511_i32_41 dim 1 : vector<8x512xf32>, i32 -> vector<8x512xf32>
    %c4_42 = arith.constant 4 : index
    %c0_43 = arith.constant 0 : index
    %89 = vector.load %arg4[%c4_42, %c0_43] : memref<8x512xf32, #tpu.memory_space<vmem>>, vector<1x512xf32>
    %90 = vector.broadcast %89 : vector<1x512xf32> to vector<8x512xf32>
    %91 = arith.mulf %88, %90 : vector<8x512xf32>
    %92 = arith.truncf %91 : vector<8x512xf32> to vector<8x512xbf16>
    %93 = tpu.concatenate %86, %87, %92 in 0 : vector<8x512xbf16>, vector<8x512xbf16>, vector<8x512xbf16> -> vector<24x512xbf16>
    %c4_44 = arith.constant 4 : index
    %c0_45 = arith.constant 0 : index
    %c0_46 = arith.constant 0 : index
    %94 = vector.load %arg2[%c4_44, %c0_45, %c0_46] : memref<9x8x128xbf16, #tpu.memory_space<vmem>>, vector<1x8x24xbf16>
    %95 = vector.shape_cast %94 : vector<1x8x24xbf16> to vector<8x24xbf16>
    %cst_47 = arith.constant dense<0.000000e+00> : vector<8x512xf32>
    %96 = tpu.matmul %95, %93, %cst_47 {dimension_numbers = #tpu.dot_dimension_numbers<[1], [0], [0], [1], [0, 0, 1, 1], [], []>} : vector<8x24xbf16>, vector<24x512xbf16>, vector<8x512xf32> -> vector<8x512xf32>
    %97 = arith.addf %81, %96 : vector<8x512xf32>
    %c497_i32_48 = arith.constant 497 : i32
    %98 = tpu.dynamic_rotate %62 by %c497_i32_48 dim 1 : vector<8x512xf32>, i32 -> vector<8x512xf32>
    %c5_49 = arith.constant 5 : index
    %c0_50 = arith.constant 0 : index
    %99 = vector.load %arg4[%c5_49, %c0_50] : memref<8x512xf32, #tpu.memory_space<vmem>>, vector<1x512xf32>
    %100 = vector.broadcast %99 : vector<1x512xf32> to vector<8x512xf32>
    %101 = arith.mulf %98, %100 : vector<8x512xf32>
    %102 = arith.truncf %101 : vector<8x512xf32> to vector<8x512xbf16>
    %c496_i32_51 = arith.constant 496 : i32
    %103 = tpu.dynamic_rotate %62 by %c496_i32_51 dim 1 : vector<8x512xf32>, i32 -> vector<8x512xf32>
    %c6_52 = arith.constant 6 : index
    %c0_53 = arith.constant 0 : index
    %104 = vector.load %arg4[%c6_52, %c0_53] : memref<8x512xf32, #tpu.memory_space<vmem>>, vector<1x512xf32>
    %105 = vector.broadcast %104 : vector<1x512xf32> to vector<8x512xf32>
    %106 = arith.mulf %103, %105 : vector<8x512xf32>
    %107 = arith.truncf %106 : vector<8x512xf32> to vector<8x512xbf16>
    %c495_i32_54 = arith.constant 495 : i32
    %108 = tpu.dynamic_rotate %62 by %c495_i32_54 dim 1 : vector<8x512xf32>, i32 -> vector<8x512xf32>
    %c7_55 = arith.constant 7 : index
    %c0_56 = arith.constant 0 : index
    %109 = vector.load %arg4[%c7_55, %c0_56] : memref<8x512xf32, #tpu.memory_space<vmem>>, vector<1x512xf32>
    %110 = vector.broadcast %109 : vector<1x512xf32> to vector<8x512xf32>
    %111 = arith.mulf %108, %110 : vector<8x512xf32>
    %112 = arith.truncf %111 : vector<8x512xf32> to vector<8x512xbf16>
    %113 = tpu.concatenate %102, %107, %112 in 0 : vector<8x512xbf16>, vector<8x512xbf16>, vector<8x512xbf16> -> vector<24x512xbf16>
    %c5_57 = arith.constant 5 : index
    %c0_58 = arith.constant 0 : index
    %c0_59 = arith.constant 0 : index
    %114 = vector.load %arg2[%c5_57, %c0_58, %c0_59] : memref<9x8x128xbf16, #tpu.memory_space<vmem>>, vector<1x8x24xbf16>
    %115 = vector.shape_cast %114 : vector<1x8x24xbf16> to vector<8x24xbf16>
    %cst_60 = arith.constant dense<0.000000e+00> : vector<8x512xf32>
    %116 = tpu.matmul %115, %113, %cst_60 {dimension_numbers = #tpu.dot_dimension_numbers<[1], [0], [0], [1], [0, 0, 1, 1], [], []>} : vector<8x24xbf16>, vector<24x512xbf16>, vector<8x512xf32> -> vector<8x512xf32>
    %117 = arith.addf %97, %116 : vector<8x512xf32>
    %c1_61 = arith.constant 1 : index
    %c0_62 = arith.constant 0 : index
    %c0_63 = arith.constant 0 : index
    %118 = vector.load %arg3[%c1_61, %c0_62, %c0_63] : memref<3x8x1xf32, #tpu.memory_space<vmem>>, vector<1x8x1xf32>
    %119 = vector.shape_cast %118 : vector<1x8x1xf32> to vector<8x1xf32>
    %120 = vector.broadcast %119 : vector<8x1xf32> to vector<8x512xf32>
    %121 = arith.addf %117, %120 : vector<8x512xf32>
    %cst_64 = arith.constant 0.00999999977 : f32
    %122 = vector.broadcast %cst_64 : f32 to vector<8x512xf32>
    %123 = arith.mulf %122, %121 : vector<8x512xf32>
    %124 = arith.maximumf %121, %123 : vector<8x512xf32>
    %125 = tpu.concatenate %124, %62 in 0 : vector<8x512xf32>, vector<8x512xf32> -> vector<16x512xf32>
    %c17_i32_65 = arith.constant 17 : i32
    %126 = tpu.dynamic_rotate %125 by %c17_i32_65 dim 1 : vector<16x512xf32>, i32 -> vector<16x512xf32>
    %c0_66 = arith.constant 0 : index
    %c0_67 = arith.constant 0 : index
    %127 = vector.load %arg4[%c0_66, %c0_67] : memref<8x512xf32, #tpu.memory_space<vmem>>, vector<1x512xf32>
    %128 = vector.broadcast %127 : vector<1x512xf32> to vector<16x512xf32>
    %129 = arith.mulf %126, %128 : vector<16x512xf32>
    %130 = arith.truncf %129 : vector<16x512xf32> to vector<16x512xbf16>
    %c16_i32_68 = arith.constant 16 : i32
    %131 = tpu.dynamic_rotate %125 by %c16_i32_68 dim 1 : vector<16x512xf32>, i32 -> vector<16x512xf32>
    %c1_69 = arith.constant 1 : index
    %c0_70 = arith.constant 0 : index
    %132 = vector.load %arg4[%c1_69, %c0_70] : memref<8x512xf32, #tpu.memory_space<vmem>>, vector<1x512xf32>
    %133 = vector.broadcast %132 : vector<1x512xf32> to vector<16x512xf32>
    %134 = arith.mulf %131, %133 : vector<16x512xf32>
    %135 = arith.truncf %134 : vector<16x512xf32> to vector<16x512xbf16>
    %c15_i32_71 = arith.constant 15 : i32
    %136 = tpu.dynamic_rotate %125 by %c15_i32_71 dim 1 : vector<16x512xf32>, i32 -> vector<16x512xf32>
    %c2_72 = arith.constant 2 : index
    %c0_73 = arith.constant 0 : index
    %137 = vector.load %arg4[%c2_72, %c0_73] : memref<8x512xf32, #tpu.memory_space<vmem>>, vector<1x512xf32>
    %138 = vector.broadcast %137 : vector<1x512xf32> to vector<16x512xf32>
    %139 = arith.mulf %136, %138 : vector<16x512xf32>
    %140 = arith.truncf %139 : vector<16x512xf32> to vector<16x512xbf16>
    %141 = tpu.concatenate %130, %135, %140 in 0 : vector<16x512xbf16>, vector<16x512xbf16>, vector<16x512xbf16> -> vector<48x512xbf16>
    %c6_74 = arith.constant 6 : index
    %c0_75 = arith.constant 0 : index
    %c0_76 = arith.constant 0 : index
    %142 = vector.load %arg2[%c6_74, %c0_75, %c0_76] : memref<9x8x128xbf16, #tpu.memory_space<vmem>>, vector<1x8x48xbf16>
    %143 = vector.shape_cast %142 : vector<1x8x48xbf16> to vector<8x48xbf16>
    %cst_77 = arith.constant dense<0.000000e+00> : vector<8x512xf32>
    %144 = tpu.matmul %143, %141, %cst_77 {dimension_numbers = #tpu.dot_dimension_numbers<[1], [0], [0], [1], [0, 0, 1, 1], [], []>} : vector<8x48xbf16>, vector<48x512xbf16>, vector<8x512xf32> -> vector<8x512xf32>
    %c1_i32_78 = arith.constant 1 : i32
    %145 = tpu.dynamic_rotate %125 by %c1_i32_78 dim 1 : vector<16x512xf32>, i32 -> vector<16x512xf32>
    %c3_79 = arith.constant 3 : index
    %c0_80 = arith.constant 0 : index
    %146 = vector.load %arg4[%c3_79, %c0_80] : memref<8x512xf32, #tpu.memory_space<vmem>>, vector<1x512xf32>
    %147 = vector.broadcast %146 : vector<1x512xf32> to vector<16x512xf32>
    %148 = arith.mulf %145, %147 : vector<16x512xf32>
    %149 = arith.truncf %148 : vector<16x512xf32> to vector<16x512xbf16>
    %150 = arith.truncf %125 : vector<16x512xf32> to vector<16x512xbf16>
    %c511_i32_81 = arith.constant 511 : i32
    %151 = tpu.dynamic_rotate %125 by %c511_i32_81 dim 1 : vector<16x512xf32>, i32 -> vector<16x512xf32>
    %c4_82 = arith.constant 4 : index
    %c0_83 = arith.constant 0 : index
    %152 = vector.load %arg4[%c4_82, %c0_83] : memref<8x512xf32, #tpu.memory_space<vmem>>, vector<1x512xf32>
    %153 = vector.broadcast %152 : vector<1x512xf32> to vector<16x512xf32>
    %154 = arith.mulf %151, %153 : vector<16x512xf32>
    %155 = arith.truncf %154 : vector<16x512xf32> to vector<16x512xbf16>
    %156 = tpu.concatenate %149, %150, %155 in 0 : vector<16x512xbf16>, vector<16x512xbf16>, vector<16x512xbf16> -> vector<48x512xbf16>
    %c7_84 = arith.constant 7 : index
    %c0_85 = arith.constant 0 : index
    %c0_86 = arith.constant 0 : index
    %157 = vector.load %arg2[%c7_84, %c0_85, %c0_86] : memref<9x8x128xbf16, #tpu.memory_space<vmem>>, vector<1x8x48xbf16>
    %158 = vector.shape_cast %157 : vector<1x8x48xbf16> to vector<8x48xbf16>
    %cst_87 = arith.constant dense<0.000000e+00> : vector<8x512xf32>
    %159 = tpu.matmul %158, %156, %cst_87 {dimension_numbers = #tpu.dot_dimension_numbers<[1], [0], [0], [1], [0, 0, 1, 1], [], []>} : vector<8x48xbf16>, vector<48x512xbf16>, vector<8x512xf32> -> vector<8x512xf32>
    %160 = arith.addf %144, %159 : vector<8x512xf32>
    %c497_i32_88 = arith.constant 497 : i32
    %161 = tpu.dynamic_rotate %125 by %c497_i32_88 dim 1 : vector<16x512xf32>, i32 -> vector<16x512xf32>
    %c5_89 = arith.constant 5 : index
    %c0_90 = arith.constant 0 : index
    %162 = vector.load %arg4[%c5_89, %c0_90] : memref<8x512xf32, #tpu.memory_space<vmem>>, vector<1x512xf32>
    %163 = vector.broadcast %162 : vector<1x512xf32> to vector<16x512xf32>
    %164 = arith.mulf %161, %163 : vector<16x512xf32>
    %165 = arith.truncf %164 : vector<16x512xf32> to vector<16x512xbf16>
    %c496_i32_91 = arith.constant 496 : i32
    %166 = tpu.dynamic_rotate %125 by %c496_i32_91 dim 1 : vector<16x512xf32>, i32 -> vector<16x512xf32>
    %c6_92 = arith.constant 6 : index
    %c0_93 = arith.constant 0 : index
    %167 = vector.load %arg4[%c6_92, %c0_93] : memref<8x512xf32, #tpu.memory_space<vmem>>, vector<1x512xf32>
    %168 = vector.broadcast %167 : vector<1x512xf32> to vector<16x512xf32>
    %169 = arith.mulf %166, %168 : vector<16x512xf32>
    %170 = arith.truncf %169 : vector<16x512xf32> to vector<16x512xbf16>
    %c495_i32_94 = arith.constant 495 : i32
    %171 = tpu.dynamic_rotate %125 by %c495_i32_94 dim 1 : vector<16x512xf32>, i32 -> vector<16x512xf32>
    %c7_95 = arith.constant 7 : index
    %c0_96 = arith.constant 0 : index
    %172 = vector.load %arg4[%c7_95, %c0_96] : memref<8x512xf32, #tpu.memory_space<vmem>>, vector<1x512xf32>
    %173 = vector.broadcast %172 : vector<1x512xf32> to vector<16x512xf32>
    %174 = arith.mulf %171, %173 : vector<16x512xf32>
    %175 = arith.truncf %174 : vector<16x512xf32> to vector<16x512xbf16>
    %176 = tpu.concatenate %165, %170, %175 in 0 : vector<16x512xbf16>, vector<16x512xbf16>, vector<16x512xbf16> -> vector<48x512xbf16>
    %c8 = arith.constant 8 : index
    %c0_97 = arith.constant 0 : index
    %c0_98 = arith.constant 0 : index
    %177 = vector.load %arg2[%c8, %c0_97, %c0_98] : memref<9x8x128xbf16, #tpu.memory_space<vmem>>, vector<1x8x48xbf16>
    %178 = vector.shape_cast %177 : vector<1x8x48xbf16> to vector<8x48xbf16>
    %cst_99 = arith.constant dense<0.000000e+00> : vector<8x512xf32>
    %179 = tpu.matmul %178, %176, %cst_99 {dimension_numbers = #tpu.dot_dimension_numbers<[1], [0], [0], [1], [0, 0, 1, 1], [], []>} : vector<8x48xbf16>, vector<48x512xbf16>, vector<8x512xf32> -> vector<8x512xf32>
    %180 = arith.addf %160, %179 : vector<8x512xf32>
    %c2_100 = arith.constant 2 : index
    %c0_101 = arith.constant 0 : index
    %c0_102 = arith.constant 0 : index
    %181 = vector.load %arg3[%c2_100, %c0_101, %c0_102] : memref<3x8x1xf32, #tpu.memory_space<vmem>>, vector<1x8x1xf32>
    %182 = vector.shape_cast %181 : vector<1x8x1xf32> to vector<8x1xf32>
    %183 = vector.broadcast %182 : vector<8x1xf32> to vector<8x512xf32>
    %184 = arith.addf %180, %183 : vector<8x512xf32>
    %185 = vector.extract_strided_slice %184 {offsets = [0, 0], sizes = [8, 256], strides = [1, 1]} : vector<8x512xf32> to vector<8x256xf32>
    %c0_103 = arith.constant 0 : index
    %c0_104 = arith.constant 0 : index
    %c0_105 = arith.constant 0 : index
    %186 = vector.load %arg5[%c0_103, %c0_104, %c0_105] : memref<2x8x256xf32, #tpu.memory_space<vmem>>, vector<1x8x256xf32>
    %187 = vector.shape_cast %186 : vector<1x8x256xf32> to vector<8x256xf32>
    %188 = vector.shape_cast %185 : vector<8x256xf32> to vector<1x8x256xf32>
    tpu.vector_store %arg5[%c0_103, %c0_104, %c0_105], %188 {strides = array<i32>} : memref<2x8x256xf32, #tpu.memory_space<vmem>>, vector<1x8x256xf32>,
    %189 = vector.extract_strided_slice %184 {offsets = [0, 256], sizes = [8, 256], strides = [1, 1]} : vector<8x512xf32> to vector<8x256xf32>
    %c1_106 = arith.constant 1 : index
    %c0_107 = arith.constant 0 : index
    %c0_108 = arith.constant 0 : index
    %190 = vector.load %arg5[%c1_106, %c0_107, %c0_108] : memref<2x8x256xf32, #tpu.memory_space<vmem>>, vector<1x8x256xf32>
    %191 = vector.shape_cast %190 : vector<1x8x256xf32> to vector<8x256xf32>
    %192 = vector.shape_cast %189 : vector<8x256xf32> to vector<1x8x256xf32>
    tpu.vector_store %arg5[%c1_106, %c0_107, %c0_108], %192 {strides = array<i32>} : memref<2x8x256xf32, #tpu.memory_space<vmem>>, vector<1x8x256xf32>,
    return
  }
  func.func @transform_0(%arg0: i32) -> (i32, i32) {
    %c0_i32 = arith.constant 0 : i32
    %c0_i32_0 = arith.constant 0 : i32
    %c0_i32_1 = arith.constant 0 : i32
    return %c0_i32, %c0_i32_0 : i32, i32
  }
  func.func @transform_1(%arg0: i32) -> (i32, i32, i32) {
    %c0_i32 = arith.constant 0 : i32
    %c0_i32_0 = arith.constant 0 : i32
    %c0_i32_1 = arith.constant 0 : i32
    %c0_i32_2 = arith.constant 0 : i32
    return %c0_i32, %c0_i32_0, %c0_i32_1 : i32, i32, i32
  }
  func.func @transform_2(%arg0: i32) -> (i32, i32, i32) {
    %c0_i32 = arith.constant 0 : i32
    %c0_i32_0 = arith.constant 0 : i32
    %c0_i32_1 = arith.constant 0 : i32
    %c0_i32_2 = arith.constant 0 : i32
    return %c0_i32, %c0_i32_0, %c0_i32_1 : i32, i32, i32
  }
  func.func @transform_3(%arg0: i32) -> (i32, i32) {
    %c0_i32 = arith.constant 0 : i32
    %c0_i32_0 = arith.constant 0 : i32
    %c0_i32_1 = arith.constant 0 : i32
    return %c0_i32, %c0_i32_0 : i32, i32
  }
  func.func @transform_4(%arg0: i32) -> (i32, i32, i32) {
    %c0_i32 = arith.constant 0 : i32
    %c0_i32_0 = arith.constant 0 : i32
    %c0_i32_1 = arith.constant 0 : i32
    %c0_i32_2 = arith.constant 0 : i32
    return %c0_i32, %c0_i32_0, %c0_i32_1 : i32, i32, i32
  }
}

</mosaic_0001>

<llo_original>
// kernel: _lambda_.1
$region0: #{_lambda_.1}
  #allocation0 [shape = 'u32[]', space=smem, size = 0x4, offset = 0x4, fixed_abs, tag = 'smem constant byte address 0x4 - core index']
  #allocation1 [shape = 'u32[144,128]{1,0:T(1,128)}', space=vmem, size = 0x12000, scoped, tag = 'internal scratch']
  %s0 = inlined_call_operand.vmem [shape: f32[8,512], index: 0, kind: input, shape index: {}]
  %s1 = inlined_call_operand.vmem [shape: bf16[9,8,128], index: 1, kind: input, shape index: {}]
  %s2 = inlined_call_operand.vmem [shape: f32[3,8,1], index: 2, kind: input, shape index: {}]
  %s3 = inlined_call_operand.vmem [shape: f32[8,512], index: 3, kind: input, shape index: {}]
  %s4 = inlined_call_operand.vmem [shape: f32[2,8,256], index: 4, kind: output, shape index: {}]
  %s5 = sld [smem:[#allocation0]]
  $region26: #{_lambda_.1} parent=0
    _
  %s7 = ssub.s32 1, %s5
  %s8 = scalar_select 0, %s7, %s5
  // Predicated region
  $region2: #{_lambda_.1} parent=0 // pred_check
    _
  $region3: #{_lambda_.1} parent=0 // pred_check_branch
    %10 = sbr.rel (0) target = $region5
  $region4: #{_lambda_.1} parent=0 // pred_region
    _
  $region5: #{_lambda_.1} parent=0 // pred_fallthru
    _
  // Predicated region
  $region6: #{_lambda_.1} parent=0 // pred_check
    _
  $region7: #{_lambda_.1} parent=0 // pred_check_branch
    %12 = sbr.rel (0) target = $region9
  $region8: #{_lambda_.1} parent=0 // pred_region
    _
  $region9: #{_lambda_.1} parent=0 // pred_fallthru
    _
  // Predicated region
  $region10: #{_lambda_.1} parent=0 // pred_check
    _
  $region11: #{_lambda_.1} parent=0 // pred_check_branch
    %14 = sbr.rel (0) target = $region13
  $region12: #{_lambda_.1} parent=0 // pred_region
    _
  $region13: #{_lambda_.1} parent=0 // pred_fallthru
    _
  // Predicated region
  $region14: #{_lambda_.1} parent=0 // pred_check
    _
  $region15: #{_lambda_.1} parent=0 // pred_check_branch
    %16 = sbr.rel (0) target = $region17
  $region16: #{_lambda_.1} parent=0 // pred_region
    _
  $region17: #{_lambda_.1} parent=0 // pred_fallthru
    _
  %v18 = vld [vmem:[%s0] sm:$0xff]
  %v19 = vld [vmem:[%s0 + $0x8] sm:$0xff]
  %v20 = vld [vmem:[%s0 + $0x10] sm:$0xff]
  %v21 = vld [vmem:[%s0 + $0x18] sm:$0xff]
  %22 = vrot.lane.b32.xlu0 %v18, 17
  %v23 = vpop.permute.xlu0 %22
  %24 = vrot.lane.b32.xlu0 %v19, 17
  %v25 = vpop.permute.xlu0 %24
  %26 = vrot.lane.b32.xlu0 %v20, 17
  %v27 = vpop.permute.xlu0 %26
  %28 = vrot.lane.b32.xlu0 %v21, 17
  %v29 = vpop.permute.xlu0 %28
  %v30 = vlaneseq
  %v31 = vand.u32 %v30, 127
  %vm32 = vcmp.lt.s32.totalorder %v31, 17
  %v33 = vsel %vm32, %v27, %v29
  %v34 = vsel %vm32, %v25, %v27
  %v35 = vsel %vm32, %v23, %v25
  %v36 = vsel %vm32, %v29, %v23
  %v37 = vld [vmem:[%s3] ss:$8 sm:$0xf]
  %v39 = vlaneseq
  %v40 = vshrl.u32 %v39, 7
  %v41 = vsub.s32 0, %v40
  %v42 = vrot.slane %v37, %v41
  %v43 = vlaneseq
  %v44 = vshrl.u32 %v43, 7
  %v45 = vsub.s32 1, %v44
  %v46 = vrot.slane %v37, %v45
  %v47 = vlaneseq
  %v48 = vshrl.u32 %v47, 7
  %v49 = vsub.s32 2, %v48
  %v50 = vrot.slane %v37, %v49
  %v51 = vlaneseq
  %v52 = vshrl.u32 %v51, 7
  %v53 = vsub.s32 3, %v52
  %v54 = vrot.slane %v37, %v53
  %v59 = vmul.f32 %v36, %v42
  %v60 = vmul.f32 %v35, %v46
  %v61 = vmul.f32 %v34, %v50
  %v62 = vmul.f32 %v33, %v54
  %v63 = vpack.c.bf16 %v59, %v59
  %v64 = vpack.c.bf16 %v60, %v60
  %v65 = vpack.c.bf16 %v61, %v61
  %v66 = vpack.c.bf16 %v62, %v62
  %67 = vrot.lane.b32.xlu0 %v18, 16
  %v68 = vpop.permute.xlu0 %67
  %69 = vrot.lane.b32.xlu0 %v19, 16
  %v70 = vpop.permute.xlu0 %69
  %71 = vrot.lane.b32.xlu0 %v20, 16
  %v72 = vpop.permute.xlu0 %71
  %73 = vrot.lane.b32.xlu0 %v21, 16
  %v74 = vpop.permute.xlu0 %73
  %vm75 = vcmp.lt.s32.totalorder %v31, 16
  %v76 = vsel %vm75, %v72, %v74
  %v77 = vsel %vm75, %v70, %v72
  %v78 = vsel %vm75, %v68, %v70
  %v79 = vsel %vm75, %v74, %v68
  %s80 = scalar_lea.vmem %s3, 1
  %v81 = vld [vmem:[%s80] ss:$8 sm:$0xf]
  %v83 = vlaneseq
  %v84 = vshrl.u32 %v83, 7
  %v85 = vsub.s32 0, %v84
  %v86 = vrot.slane %v81, %v85
  %v87 = vlaneseq
  %v88 = vshrl.u32 %v87, 7
  %v89 = vsub.s32 1, %v88
  %v90 = vrot.slane %v81, %v89
  %v91 = vlaneseq
  %v92 = vshrl.u32 %v91, 7
  %v93 = vsub.s32 2, %v92
  %v94 = vrot.slane %v81, %v93
  %v95 = vlaneseq
  %v96 = vshrl.u32 %v95, 7
  %v97 = vsub.s32 3, %v96
  %v98 = vrot.slane %v81, %v97
  %v103 = vmul.f32 %v79, %v86
  %v104 = vmul.f32 %v78, %v90
  %v105 = vmul.f32 %v77, %v94
  %v106 = vmul.f32 %v76, %v98
  %v107 = vpack.c.bf16 %v103, %v103
  %v108 = vpack.c.bf16 %v104, %v104
  %v109 = vpack.c.bf16 %v105, %v105
  %v110 = vpack.c.bf16 %v106, %v106
  %111 = vrot.lane.b32.xlu0 %v18, 15
  %v112 = vpop.permute.xlu0 %111
  %113 = vrot.lane.b32.xlu0 %v19, 15
  %v114 = vpop.permute.xlu0 %113
  %115 = vrot.lane.b32.xlu0 %v20, 15
  %v116 = vpop.permute.xlu0 %115
  %117 = vrot.lane.b32.xlu0 %v21, 15
  %v118 = vpop.permute.xlu0 %117
  %vm119 = vcmp.lt.s32.totalorder %v31, 15
  %v120 = vsel %vm119, %v116, %v118
  %v121 = vsel %vm119, %v114, %v116
  %v122 = vsel %vm119, %v112, %v114
  %v123 = vsel %vm119, %v118, %v112
  %s124 = scalar_lea.vmem %s3, 2
  %v125 = vld [vmem:[%s124] ss:$8 sm:$0xf]
  %v127 = vlaneseq
  %v128 = vshrl.u32 %v127, 7
  %v129 = vsub.s32 0, %v128
  %v130 = vrot.slane %v125, %v129
  %v131 = vlaneseq
  %v132 = vshrl.u32 %v131, 7
  %v133 = vsub.s32 1, %v132
  %v134 = vrot.slane %v125, %v133
  %v135 = vlaneseq
  %v136 = vshrl.u32 %v135, 7
  %v137 = vsub.s32 2, %v136
  %v138 = vrot.slane %v125, %v137
  %v139 = vlaneseq
  %v140 = vshrl.u32 %v139, 7
  %v141 = vsub.s32 3, %v140
  %v142 = vrot.slane %v125, %v141
  %v147 = vmul.f32 %v123, %v130
  %v148 = vmul.f32 %v122, %v134
  %v149 = vmul.f32 %v121, %v138
  %v150 = vmul.f32 %v120, %v142
  %v151 = vpack.c.bf16 %v147, %v147
  %v152 = vpack.c.bf16 %v148, %v148
  %v153 = vpack.c.bf16 %v149, %v149
  %v154 = vpack.c.bf16 %v150, %v150
  %v159 = vrot.slane %v107, 4
  %v160 = vrot.slane %v108, 4
  %v161 = vrot.slane %v109, 4
  %v162 = vrot.slane %v110, 4
  %vm163 = vcmask 1043456
  %v166 = vsel %vm163, %v63, %v159
  %v170 = vsel %vm163, %v64, %v160
  %v174 = vsel %vm163, %v65, %v161
  %v178 = vsel %vm163, %v66, %v162
  %v180 = vld [vmem:[%s1] sm:$0xf]
  %181 = vrot.lane.b32.xlu0 %v18, 1
  %v182 = vpop.permute.xlu0 %181
  %183 = vrot.lane.b32.xlu0 %v19, 1
  %v184 = vpop.permute.xlu0 %183
  %185 = vrot.lane.b32.xlu0 %v20, 1
  %v186 = vpop.permute.xlu0 %185
  %187 = vrot.lane.b32.xlu0 %v21, 1
  %v188 = vpop.permute.xlu0 %187
  %vm189 = vcmp.lt.s32.totalorder %v31, 1
  %v190 = vsel %vm189, %v186, %v188
  %v191 = vsel %vm189, %v184, %v186
  %v192 = vsel %vm189, %v182, %v184
  %v193 = vsel %vm189, %v188, %v182
  %s194 = scalar_lea.vmem %s3, 3
  %v195 = vld [vmem:[%s194] ss:$8 sm:$0xf]
  %v197 = vlaneseq
  %v198 = vshrl.u32 %v197, 7
  %v199 = vsub.s32 0, %v198
  %v200 = vrot.slane %v195, %v199
  %v201 = vlaneseq
  %v202 = vshrl.u32 %v201, 7
  %v203 = vsub.s32 1, %v202
  %v204 = vrot.slane %v195, %v203
  %v205 = vlaneseq
  %v206 = vshrl.u32 %v205, 7
  %v207 = vsub.s32 2, %v206
  %v208 = vrot.slane %v195, %v207
  %v209 = vlaneseq
  %v210 = vshrl.u32 %v209, 7
  %v211 = vsub.s32 3, %v210
  %v212 = vrot.slane %v195, %v211
  %v217 = vmul.f32 %v193, %v200
  %v218 = vmul.f32 %v192, %v204
  %v219 = vmul.f32 %v191, %v208
  %v220 = vmul.f32 %v190, %v212
  %v221 = vpack.c.bf16 %v217, %v217
  %v222 = vpack.c.bf16 %v218, %v218
  %v223 = vpack.c.bf16 %v219, %v219
  %v224 = vpack.c.bf16 %v220, %v220
  %v225 = vpack.c.bf16 %v18, %v18
  %v226 = vpack.c.bf16 %v19, %v19
  %v227 = vpack.c.bf16 %v20, %v20
  %v228 = vpack.c.bf16 %v21, %v21
  %229 = vrot.lane.b32.xlu0 %v18, 127
  %v230 = vpop.permute.xlu0 %229
  %231 = vrot.lane.b32.xlu0 %v19, 127
  %v232 = vpop.permute.xlu0 %231
  %233 = vrot.lane.b32.xlu0 %v20, 127
  %v234 = vpop.permute.xlu0 %233
  %235 = vrot.lane.b32.xlu0 %v21, 127
  %v236 = vpop.permute.xlu0 %235
  %vm237 = vcmp.lt.s32.totalorder %v31, 127
  %v238 = vsel %vm237, %v234, %v236
  %v239 = vsel %vm237, %v232, %v234
  %v240 = vsel %vm237, %v230, %v232
  %v241 = vsel %vm237, %v236, %v230
  %s242 = scalar_lea.vmem %s3, 4
  %v243 = vld [vmem:[%s242] ss:$8 sm:$0xf]
  %v245 = vlaneseq
  %v246 = vshrl.u32 %v245, 7
  %v247 = vsub.s32 0, %v246
  %v248 = vrot.slane %v243, %v247
  %v249 = vlaneseq
  %v250 = vshrl.u32 %v249, 7
  %v251 = vsub.s32 1, %v250
  %v252 = vrot.slane %v243, %v251
  %v253 = vlaneseq
  %v254 = vshrl.u32 %v253, 7
  %v255 = vsub.s32 2, %v254
  %v256 = vrot.slane %v243, %v255
  %v257 = vlaneseq
  %v258 = vshrl.u32 %v257, 7
  %v259 = vsub.s32 3, %v258
  %v260 = vrot.slane %v243, %v259
  %v265 = vmul.f32 %v240, %v248
  %v266 = vmul.f32 %v239, %v252
  %v267 = vmul.f32 %v238, %v256
  %v268 = vmul.f32 %v241, %v260
  %v269 = vpack.c.bf16 %v265, %v265
  %v270 = vpack.c.bf16 %v266, %v266
  %v271 = vpack.c.bf16 %v267, %v267
  %v272 = vpack.c.bf16 %v268, %v268
  %v277 = vrot.slane %v225, 4
  %v278 = vrot.slane %v226, 4
  %v279 = vrot.slane %v227, 4
  %v280 = vrot.slane %v228, 4
  %v283 = vsel %vm163, %v221, %v277
  %v287 = vsel %vm163, %v222, %v278
  %v291 = vsel %vm163, %v223, %v279
  %v295 = vsel %vm163, %v224, %v280
  %s297 = scalar_lea.vmem %s1, 4
  %v298 = vld [vmem:[%s297] sm:$0xf]
  %vm299 = vcmask 195584
  %v301 = vsel %vm299, %v298, 0
  %v304 = vsel %vm163, %v269, 0
  %v307 = vsel %vm163, %v270, 0
  %v310 = vsel %vm163, %v271, 0
  %v313 = vsel %vm163, %v272, 0
  %315 = vmatprep.subr.bf16.mxu0 0
  %316 = vmatpush1.bf16.msra.mxu0 0
  %317 = vmatprep.subr.bf16.mxu0 0
  %318 = vmatpush1.bf16.msra.mxu0 0
  %319 = vmatprep.subr.bf16.mxu0 0
  %320 = vmatpush1.bf16.msra.mxu0 0
  %321 = vmatprep.subr.bf16.mxu0 0
  %322 = vmatpush1.bf16.msra.mxu0 0
  %323 = vmatprep.subr.bf16.mxu0 0
  %324 = vmatpush1.bf16.msra.mxu0 0
  %325 = vmatprep.subr.bf16.mxu0 0
  %326 = vmatpush1.bf16.msra.mxu0 0
  %327 = vmatprep.subr.bf16.mxu0 %v307
  %328 = vmatpush1.bf16.msra.mxu0 %v304
  %329 = vmatprep.subr.bf16.mxu0 %v287
  %330 = vmatpush1.bf16.msra.mxu0 %v283
  %331 = vmatprep.subr.bf16.mxu0 0
  %332 = vmatpush2.bf16.msra.mxu0 0
  %333 = vmatprep.subr.bf16.mxu0 0
  %334 = vmatpush2.bf16.msra.mxu0 0
  %335 = vmatprep.subr.bf16.mxu0 0
  %336 = vmatpush2.bf16.msra.mxu0 0
  %337 = vmatprep.subr.bf16.mxu0 0
  %338 = vmatpush2.bf16.msra.mxu0 0
  %339 = vmatprep.subr.bf16.mxu0 0
  %340 = vmatpush2.bf16.msra.mxu0 0
  %341 = vmatprep.subr.bf16.mxu0 0
  %342 = vmatpush2.bf16.msra.mxu0 0
  %343 = vmatprep.subr.bf16.mxu0 0
  %344 = vmatpush2.bf16.msra.mxu0 0
  %345 = vmatprep.subr.bf16.mxu0 0
  %346 = vmatpush2.bf16.msra.mxu0 0
  %347 = vmatprep.mubr.bf16.mxu0 0
  %348 = vmatmul.mubr.bf16.gmra.mxu0 %v301
  %v349 = vpop.f32.mrf.mxu0
  %v350 = vadd.f32 0.0, %v349
  %v351 = vpop.f32.mrf.mxu0
  %v352 = vadd.f32 0.0, %v351
  %v353 = vpop.f32.mrf.mxu0
  %v354 = vpop.f32.mrf.mxu0
  %355 = vdwg.mxu0
  %356 = vmatprep.subr.bf16.mxu0 0
  %357 = vmatpush1.bf16.msra.mxu0 0
  %358 = vmatprep.subr.bf16.mxu0 0
  %359 = vmatpush1.bf16.msra.mxu0 0
  %360 = vmatprep.subr.bf16.mxu0 0
  %361 = vmatpush1.bf16.msra.mxu0 0
  %362 = vmatprep.subr.bf16.mxu0 0
  %363 = vmatpush1.bf16.msra.mxu0 0
  %364 = vmatprep.subr.bf16.mxu0 0
  %365 = vmatpush1.bf16.msra.mxu0 0
  %366 = vmatprep.subr.bf16.mxu0 0
  %367 = vmatpush1.bf16.msra.mxu0 0
  %368 = vmatprep.subr.bf16.mxu0 %v313
  %369 = vmatpush1.bf16.msra.mxu0 %v310
  %370 = vmatprep.subr.bf16.mxu0 %v295
  %371 = vmatpush1.bf16.msra.mxu0 %v291
  %372 = vmatprep.subr.bf16.mxu0 0
  %373 = vmatpush2.bf16.msra.mxu0 0
  %374 = vmatprep.subr.bf16.mxu0 0
  %375 = vmatpush2.bf16.msra.mxu0 0
  %376 = vmatprep.subr.bf16.mxu0 0
  %377 = vmatpush2.bf16.msra.mxu0 0
  %378 = vmatprep.subr.bf16.mxu0 0
  %379 = vmatpush2.bf16.msra.mxu0 0
  %380 = vmatprep.subr.bf16.mxu0 0
  %381 = vmatpush2.bf16.msra.mxu0 0
  %382 = vmatprep.subr.bf16.mxu0 0
  %383 = vmatpush2.bf16.msra.mxu0 0
  %384 = vmatprep.subr.bf16.mxu0 0
  %385 = vmatpush2.bf16.msra.mxu0 0
  %386 = vmatprep.subr.bf16.mxu0 0
  %387 = vmatpush2.bf16.msra.mxu0 0
  %388 = vmatprep.mubr.bf16.mxu0 0
  %389 = vmatmul.mubr.bf16.gmra.mxu0 %v301
  %v390 = vpop.f32.mrf.mxu0
  %v391 = vadd.f32 0.0, %v390
  %v392 = vpop.f32.mrf.mxu0
  %v393 = vadd.f32 0.0, %v392
  %v394 = vpop.f32.mrf.mxu0
  %v395 = vpop.f32.mrf.mxu0
  %396 = vdwg.mxu0
  %v398 = vsel %vm299, %v180, 0
  %v401 = vsel %vm163, %v151, 0
  %v404 = vsel %vm163, %v152, 0
  %v407 = vsel %vm163, %v153, 0
  %v410 = vsel %vm163, %v154, 0
  %412 = vmatprep.subr.bf16.mxu0 0
  %413 = vmatpush1.bf16.msra.mxu0 0
  %414 = vmatprep.subr.bf16.mxu0 0
  %415 = vmatpush1.bf16.msra.mxu0 0
  %416 = vmatprep.subr.bf16.mxu0 0
  %417 = vmatpush1.bf16.msra.mxu0 0
  %418 = vmatprep.subr.bf16.mxu0 0
  %419 = vmatpush1.bf16.msra.mxu0 0
  %420 = vmatprep.subr.bf16.mxu0 0
  %421 = vmatpush1.bf16.msra.mxu0 0
  %422 = vmatprep.subr.bf16.mxu0 0
  %423 = vmatpush1.bf16.msra.mxu0 0
  %424 = vmatprep.subr.bf16.mxu0 %v404
  %425 = vmatpush1.bf16.msra.mxu0 %v401
  %426 = vmatprep.subr.bf16.mxu0 %v170
  %427 = vmatpush1.bf16.msra.mxu0 %v166
  %428 = vmatprep.subr.bf16.mxu0 0
  %429 = vmatpush2.bf16.msra.mxu0 0
  %430 = vmatprep.subr.bf16.mxu0 0
  %431 = vmatpush2.bf16.msra.mxu0 0
  %432 = vmatprep.subr.bf16.mxu0 0
  %433 = vmatpush2.bf16.msra.mxu0 0
  %434 = vmatprep.subr.bf16.mxu0 0
  %435 = vmatpush2.bf16.msra.mxu0 0
  %436 = vmatprep.subr.bf16.mxu0 0
  %437 = vmatpush2.bf16.msra.mxu0 0
  %438 = vmatprep.subr.bf16.mxu0 0
  %439 = vmatpush2.bf16.msra.mxu0 0
  %440 = vmatprep.subr.bf16.mxu0 0
  %441 = vmatpush2.bf16.msra.mxu0 0
  %442 = vmatprep.subr.bf16.mxu0 0
  %443 = vmatpush2.bf16.msra.mxu0 0
  %444 = vmatprep.mubr.bf16.mxu0 0
  %445 = vmatmul.mubr.bf16.gmra.mxu0 %v398
  %v446 = vpop.f32.mrf.mxu0
  %v447 = vadd.f32 %v350, %v446
  %v448 = vpop.f32.mrf.mxu0
  %v449 = vadd.f32 %v352, %v448
  %v450 = vpop.f32.mrf.mxu0
  %v451 = vpop.f32.mrf.mxu0
  %452 = vdwg.mxu0
  %453 = vmatprep.subr.bf16.mxu0 0
  %454 = vmatpush1.bf16.msra.mxu0 0
  %455 = vmatprep.subr.bf16.mxu0 0
  %456 = vmatpush1.bf16.msra.mxu0 0
  %457 = vmatprep.subr.bf16.mxu0 0
  %458 = vmatpush1.bf16.msra.mxu0 0
  %459 = vmatprep.subr.bf16.mxu0 0
  %460 = vmatpush1.bf16.msra.mxu0 0
  %461 = vmatprep.subr.bf16.mxu0 0
  %462 = vmatpush1.bf16.msra.mxu0 0
  %463 = vmatprep.subr.bf16.mxu0 0
  %464 = vmatpush1.bf16.msra.mxu0 0
  %465 = vmatprep.subr.bf16.mxu0 %v410
  %466 = vmatpush1.bf16.msra.mxu0 %v407
  %467 = vmatprep.subr.bf16.mxu0 %v178
  %468 = vmatpush1.bf16.msra.mxu0 %v174
  %469 = vmatprep.subr.bf16.mxu0 0
  %470 = vmatpush2.bf16.msra.mxu0 0
  %471 = vmatprep.subr.bf16.mxu0 0
  %472 = vmatpush2.bf16.msra.mxu0 0
  %473 = vmatprep.subr.bf16.mxu0 0
  %474 = vmatpush2.bf16.msra.mxu0 0
  %475 = vmatprep.subr.bf16.mxu0 0
  %476 = vmatpush2.bf16.msra.mxu0 0
  %477 = vmatprep.subr.bf16.mxu0 0
  %478 = vmatpush2.bf16.msra.mxu0 0
  %479 = vmatprep.subr.bf16.mxu0 0
  %480 = vmatpush2.bf16.msra.mxu0 0
  %481 = vmatprep.subr.bf16.mxu0 0
  %482 = vmatpush2.bf16.msra.mxu0 0
  %483 = vmatprep.subr.bf16.mxu0 0
  %484 = vmatpush2.bf16.msra.mxu0 0
  %485 = vmatprep.mubr.bf16.mxu0 0
  %486 = vmatmul.mubr.bf16.gmra.mxu0 %v398
  %v487 = vpop.f32.mrf.mxu0
  %v488 = vadd.f32 %v391, %v487
  %v489 = vpop.f32.mrf.mxu0
  %v490 = vadd.f32 %v393, %v489
  %v491 = vpop.f32.mrf.mxu0
  %v492 = vpop.f32.mrf.mxu0
  %493 = vdwg.mxu0
  %494 = vrot.lane.b32.xlu0 %v18, 113
  %v495 = vpop.permute.xlu0 %494
  %496 = vrot.lane.b32.xlu0 %v19, 113
  %v497 = vpop.permute.xlu0 %496
  %498 = vrot.lane.b32.xlu0 %v20, 113
  %v499 = vpop.permute.xlu0 %498
  %500 = vrot.lane.b32.xlu0 %v21, 113
  %v501 = vpop.permute.xlu0 %500
  %vm502 = vcmp.lt.s32.totalorder %v31, 113
  %v503 = vsel %vm502, %v499, %v501
  %v504 = vsel %vm502, %v497, %v499
  %v505 = vsel %vm502, %v495, %v497
  %v506 = vsel %vm502, %v501, %v495
  %s507 = scalar_lea.vmem %s3, 5
  %v508 = vld [vmem:[%s507] ss:$8 sm:$0xf]
  %v510 = vlaneseq
  %v511 = vshrl.u32 %v510, 7
  %v512 = vsub.s32 0, %v511
  %v513 = vrot.slane %v508, %v512
  %v514 = vlaneseq
  %v515 = vshrl.u32 %v514, 7
  %v516 = vsub.s32 1, %v515
  %v517 = vrot.slane %v508, %v516
  %v518 = vlaneseq
  %v519 = vshrl.u32 %v518, 7
  %v520 = vsub.s32 2, %v519
  %v521 = vrot.slane %v508, %v520
  %v522 = vlaneseq
  %v523 = vshrl.u32 %v522, 7
  %v524 = vsub.s32 3, %v523
  %v525 = vrot.slane %v508, %v524
  %v530 = vmul.f32 %v505, %v513
  %v531 = vmul.f32 %v504, %v517
  %v532 = vmul.f32 %v503, %v521
  %v533 = vmul.f32 %v506, %v525
  %v534 = vpack.c.bf16 %v530, %v530
  %v535 = vpack.c.bf16 %v531, %v531
  %v536 = vpack.c.bf16 %v532, %v532
  %v537 = vpack.c.bf16 %v533, %v533
  %538 = vrot.lane.b32.xlu0 %v18, 112
  %v539 = vpop.permute.xlu0 %538
  %540 = vrot.lane.b32.xlu0 %v19, 112
  %v541 = vpop.permute.xlu0 %540
  %542 = vrot.lane.b32.xlu0 %v20, 112
  %v543 = vpop.permute.xlu0 %542
  %544 = vrot.lane.b32.xlu0 %v21, 112
  %v545 = vpop.permute.xlu0 %544
  %vm546 = vcmp.lt.s32.totalorder %v31, 112
  %v547 = vsel %vm546, %v543, %v545
  %v548 = vsel %vm546, %v541, %v543
  %v549 = vsel %vm546, %v539, %v541
  %v550 = vsel %vm546, %v545, %v539
  %s551 = scalar_lea.vmem %s3, 6
  %v552 = vld [vmem:[%s551] ss:$8 sm:$0xf]
  %v554 = vlaneseq
  %v555 = vshrl.u32 %v554, 7
  %v556 = vsub.s32 0, %v555
  %v557 = vrot.slane %v552, %v556
  %v558 = vlaneseq
  %v559 = vshrl.u32 %v558, 7
  %v560 = vsub.s32 1, %v559
  %v561 = vrot.slane %v552, %v560
  %v562 = vlaneseq
  %v563 = vshrl.u32 %v562, 7
  %v564 = vsub.s32 2, %v563
  %v565 = vrot.slane %v552, %v564
  %v566 = vlaneseq
  %v567 = vshrl.u32 %v566, 7
  %v568 = vsub.s32 3, %v567
  %v569 = vrot.slane %v552, %v568
  %v574 = vmul.f32 %v549, %v557
  %v575 = vmul.f32 %v548, %v561
  %v576 = vmul.f32 %v547, %v565
  %v577 = vmul.f32 %v550, %v569
  %v578 = vpack.c.bf16 %v574, %v574
  %v579 = vpack.c.bf16 %v575, %v575
  %v580 = vpack.c.bf16 %v576, %v576
  %v581 = vpack.c.bf16 %v577, %v577
  %582 = vrot.lane.b32.xlu0 %v18, 111
  %v583 = vpop.permute.xlu0 %582
  %584 = vrot.lane.b32.xlu0 %v19, 111
  %v585 = vpop.permute.xlu0 %584
  %586 = vrot.lane.b32.xlu0 %v20, 111
  %v587 = vpop.permute.xlu0 %586
  %588 = vrot.lane.b32.xlu0 %v21, 111
  %v589 = vpop.permute.xlu0 %588
  %vm590 = vcmp.lt.s32.totalorder %v31, 111
  %v591 = vsel %vm590, %v587, %v589
  %v592 = vsel %vm590, %v585, %v587
  %v593 = vsel %vm590, %v583, %v585
  %v594 = vsel %vm590, %v589, %v583
  %s595 = scalar_lea.vmem %s3, 7
  %v596 = vld [vmem:[%s595] ss:$8 sm:$0xf]
  %v598 = vlaneseq
  %v599 = vshrl.u32 %v598, 7
  %v600 = vsub.s32 0, %v599
  %v601 = vrot.slane %v596, %v600
  %v602 = vlaneseq
  %v603 = vshrl.u32 %v602, 7
  %v604 = vsub.s32 1, %v603
  %v605 = vrot.slane %v596, %v604
  %v606 = vlaneseq
  %v607 = vshrl.u32 %v606, 7
  %v608 = vsub.s32 2, %v607
  %v609 = vrot.slane %v596, %v608
  %v610 = vlaneseq
  %v611 = vshrl.u32 %v610, 7
  %v612 = vsub.s32 3, %v611
  %v613 = vrot.slane %v596, %v612
  %v618 = vmul.f32 %v593, %v601
  %v619 = vmul.f32 %v592, %v605
  %v620 = vmul.f32 %v591, %v609
  %v621 = vmul.f32 %v594, %v613
  %v622 = vpack.c.bf16 %v618, %v618
  %v623 = vpack.c.bf16 %v619, %v619
  %v624 = vpack.c.bf16 %v620, %v620
  %v625 = vpack.c.bf16 %v621, %v621
  %v630 = vrot.slane %v578, 4
  %v631 = vrot.slane %v579, 4
  %v632 = vrot.slane %v580, 4
  %v633 = vrot.slane %v581, 4
  %v636 = vsel %vm163, %v534, %v630
  %v640 = vsel %vm163, %v535, %v631
  %v644 = vsel %vm163, %v536, %v632
  %v648 = vsel %vm163, %v537, %v633
  %s650 = scalar_lea.vmem %s1, 8
  %v651 = vld [vmem:[%s650] sm:$0xf]
  %v653 = vsel %vm299, %v651, 0
  %v656 = vsel %vm163, %v622, 0
  %v659 = vsel %vm163, %v623, 0
  %v662 = vsel %vm163, %v624, 0
  %v665 = vsel %vm163, %v625, 0
  %667 = vmatprep.subr.bf16.mxu0 0
  %668 = vmatpush1.bf16.msra.mxu0 0
  %669 = vmatprep.subr.bf16.mxu0 0
  %670 = vmatpush1.bf16.msra.mxu0 0
  %671 = vmatprep.subr.bf16.mxu0 0
  %672 = vmatpush1.bf16.msra.mxu0 0
  %673 = vmatprep.subr.bf16.mxu0 0
  %674 = vmatpush1.bf16.msra.mxu0 0
  %675 = vmatprep.subr.bf16.mxu0 0
  %676 = vmatpush1.bf16.msra.mxu0 0
  %677 = vmatprep.subr.bf16.mxu0 0
  %678 = vmatpush1.bf16.msra.mxu0 0
  %679 = vmatprep.subr.bf16.mxu0 %v659
  %680 = vmatpush1.bf16.msra.mxu0 %v656
  %681 = vmatprep.subr.bf16.mxu0 %v640
  %682 = vmatpush1.bf16.msra.mxu0 %v636
  %683 = vmatprep.subr.bf16.mxu0 0
  %684 = vmatpush2.bf16.msra.mxu0 0
  %685 = vmatprep.subr.bf16.mxu0 0
  %686 = vmatpush2.bf16.msra.mxu0 0
  %687 = vmatprep.subr.bf16.mxu0 0
  %688 = vmatpush2.bf16.msra.mxu0 0
  %689 = vmatprep.subr.bf16.mxu0 0
  %690 = vmatpush2.bf16.msra.mxu0 0
  %691 = vmatprep.subr.bf16.mxu0 0
  %692 = vmatpush2.bf16.msra.mxu0 0
  %693 = vmatprep.subr.bf16.mxu0 0
  %694 = vmatpush2.bf16.msra.mxu0 0
  %695 = vmatprep.subr.bf16.mxu0 0
  %696 = vmatpush2.bf16.msra.mxu0 0
  %697 = vmatprep.subr.bf16.mxu0 0
  %698 = vmatpush2.bf16.msra.mxu0 0
  %699 = vmatprep.mubr.bf16.mxu0 0
  %700 = vmatmul.mubr.bf16.gmra.mxu0 %v653
  %v701 = vpop.f32.mrf.mxu0
  %v702 = vadd.f32 0.0, %v701
  %v703 = vpop.f32.mrf.mxu0
  %v704 = vadd.f32 0.0, %v703
  %v705 = vpop.f32.mrf.mxu0
  %v706 = vpop.f32.mrf.mxu0
  %707 = vdwg.mxu0
  %708 = vmatprep.subr.bf16.mxu0 0
  %709 = vmatpush1.bf16.msra.mxu0 0
  %710 = vmatprep.subr.bf16.mxu0 0
  %711 = vmatpush1.bf16.msra.mxu0 0
  %712 = vmatprep.subr.bf16.mxu0 0
  %713 = vmatpush1.bf16.msra.mxu0 0
  %714 = vmatprep.subr.bf16.mxu0 0
  %715 = vmatpush1.bf16.msra.mxu0 0
  %716 = vmatprep.subr.bf16.mxu0 0
  %717 = vmatpush1.bf16.msra.mxu0 0
  %718 = vmatprep.subr.bf16.mxu0 0
  %719 = vmatpush1.bf16.msra.mxu0 0
  %720 = vmatprep.subr.bf16.mxu0 %v665
  %721 = vmatpush1.bf16.msra.mxu0 %v662
  %722 = vmatprep.subr.bf16.mxu0 %v648
  %723 = vmatpush1.bf16.msra.mxu0 %v644
  %724 = vmatprep.subr.bf16.mxu0 0
  %725 = vmatpush2.bf16.msra.mxu0 0
  %726 = vmatprep.subr.bf16.mxu0 0
  %727 = vmatpush2.bf16.msra.mxu0 0
  %728 = vmatprep.subr.bf16.mxu0 0
  %729 = vmatpush2.bf16.msra.mxu0 0
  %730 = vmatprep.subr.bf16.mxu0 0
  %731 = vmatpush2.bf16.msra.mxu0 0
  %732 = vmatprep.subr.bf16.mxu0 0
  %733 = vmatpush2.bf16.msra.mxu0 0
  %734 = vmatprep.subr.bf16.mxu0 0
  %735 = vmatpush2.bf16.msra.mxu0 0
  %736 = vmatprep.subr.bf16.mxu0 0
  %737 = vmatpush2.bf16.msra.mxu0 0
  %738 = vmatprep.subr.bf16.mxu0 0
  %739 = vmatpush2.bf16.msra.mxu0 0
  %740 = vmatprep.mubr.bf16.mxu0 0
  %741 = vmatmul.mubr.bf16.gmra.mxu0 %v653
  %v742 = vpop.f32.mrf.mxu0
  %v743 = vadd.f32 0.0, %v742
  %v744 = vpop.f32.mrf.mxu0
  %v745 = vadd.f32 0.0, %v744
  %v746 = vpop.f32.mrf.mxu0
  %v747 = vpop.f32.mrf.mxu0
  %748 = vdwg.mxu0
  %v749 = vadd.f32 %v447, %v702
  %v750 = vadd.f32 %v449, %v704
  %v751 = vadd.f32 %v488, %v743
  %v752 = vadd.f32 %v490, %v745
  %v753 = vld [vmem:[%s2] sm:$0xff]
  %755 = vset.pattern.permute.xlu0 0
  %756 = vperm.xlu0 %755, %v753
  %v757 = vpop.permute.xlu0 %756
  %v759 = vadd.f32 %v749, %v757
  %v760 = vadd.f32 %v750, %v757
  %v761 = vadd.f32 %v751, %v757
  %v762 = vadd.f32 %v752, %v757
  %v763 = vmul.f32 %v759, 0.01
  %v764 = vmul.f32 %v760, 0.01
  %v765 = vmul.f32 %v761, 0.01
  %v766 = vmul.f32 %v762, 0.01
  %v767 = vmax.f32 %v759, %v763
  %v768 = vmax.f32 %v760, %v764
  %v769 = vmax.f32 %v761, %v765
  %v770 = vmax.f32 %v762, %v766
  %771 = vrot.lane.b32.xlu0 %v767, 17
  %v772 = vpop.permute.xlu0 %771
  %773 = vrot.lane.b32.xlu0 %v768, 17
  %v774 = vpop.permute.xlu0 %773
  %775 = vrot.lane.b32.xlu0 %v769, 17
  %v776 = vpop.permute.xlu0 %775
  %777 = vrot.lane.b32.xlu0 %v770, 17
  %v778 = vpop.permute.xlu0 %777
  %v779 = vsel %vm32, %v776, %v778
  %v780 = vsel %vm32, %v774, %v776
  %v781 = vsel %vm32, %v772, %v774
  %v782 = vsel %vm32, %v778, %v772
  %v783 = vmul.f32 %v782, %v42
  %v784 = vmul.f32 %v781, %v46
  %v785 = vmul.f32 %v780, %v50
  %v786 = vmul.f32 %v779, %v54
  %v787 = vpack.c.bf16 %v783, %v783
  %v788 = vpack.c.bf16 %v784, %v784
  %v789 = vpack.c.bf16 %v785, %v785
  %v790 = vpack.c.bf16 %v786, %v786
  %791 = vrot.lane.b32.xlu0 %v767, 16
  %v792 = vpop.permute.xlu0 %791
  %793 = vrot.lane.b32.xlu0 %v768, 16
  %v794 = vpop.permute.xlu0 %793
  %795 = vrot.lane.b32.xlu0 %v769, 16
  %v796 = vpop.permute.xlu0 %795
  %797 = vrot.lane.b32.xlu0 %v770, 16
  %v798 = vpop.permute.xlu0 %797
  %v799 = vsel %vm75, %v796, %v798
  %v800 = vsel %vm75, %v794, %v796
  %v801 = vsel %vm75, %v792, %v794
  %v802 = vsel %vm75, %v798, %v792
  %v803 = vmul.f32 %v802, %v86
  %v804 = vmul.f32 %v801, %v90
  %v805 = vmul.f32 %v800, %v94
  %v806 = vmul.f32 %v799, %v98
  %v807 = vpack.c.bf16 %v803, %v803
  %v808 = vpack.c.bf16 %v804, %v804
  %v809 = vpack.c.bf16 %v805, %v805
  %v810 = vpack.c.bf16 %v806, %v806
  %811 = vrot.lane.b32.xlu0 %v767, 15
  %v812 = vpop.permute.xlu0 %811
  %813 = vrot.lane.b32.xlu0 %v768, 15
  %v814 = vpop.permute.xlu0 %813
  %815 = vrot.lane.b32.xlu0 %v769, 15
  %v816 = vpop.permute.xlu0 %815
  %817 = vrot.lane.b32.xlu0 %v770, 15
  %v818 = vpop.permute.xlu0 %817
  %v819 = vsel %vm119, %v816, %v818
  %v820 = vsel %vm119, %v814, %v816
  %v821 = vsel %vm119, %v812, %v814
  %v822 = vsel %vm119, %v818, %v812
  %v823 = vmul.f32 %v822, %v130
  %v824 = vmul.f32 %v821, %v134
  %v825 = vmul.f32 %v820, %v138
  %v826 = vmul.f32 %v819, %v142
  %v827 = vpack.c.bf16 %v823, %v823
  %v828 = vpack.c.bf16 %v824, %v824
  %v829 = vpack.c.bf16 %v825, %v825
  %v830 = vpack.c.bf16 %v826, %v826
  %v835 = vrot.slane %v807, 4
  %v836 = vrot.slane %v808, 4
  %v837 = vrot.slane %v809, 4
  %v838 = vrot.slane %v810, 4
  %v841 = vsel %vm163, %v787, %v835
  %v845 = vsel %vm163, %v788, %v836
  %v849 = vsel %vm163, %v789, %v837
  %v853 = vsel %vm163, %v790, %v838
  %s855 = scalar_lea.vmem %s1, 12
  %v856 = vld [vmem:[%s855] sm:$0xf]
  %857 = vrot.lane.b32.xlu0 %v767, 1
  %v858 = vpop.permute.xlu0 %857
  %859 = vrot.lane.b32.xlu0 %v768, 1
  %v860 = vpop.permute.xlu0 %859
  %861 = vrot.lane.b32.xlu0 %v769, 1
  %v862 = vpop.permute.xlu0 %861
  %863 = vrot.lane.b32.xlu0 %v770, 1
  %v864 = vpop.permute.xlu0 %863
  %v865 = vsel %vm189, %v862, %v864
  %v866 = vsel %vm189, %v860, %v862
  %v867 = vsel %vm189, %v858, %v860
  %v868 = vsel %vm189, %v864, %v858
  %v869 = vmul.f32 %v868, %v200
  %v870 = vmul.f32 %v867, %v204
  %v871 = vmul.f32 %v866, %v208
  %v872 = vmul.f32 %v865, %v212
  %v873 = vpack.c.bf16 %v869, %v869
  %v874 = vpack.c.bf16 %v870, %v870
  %v875 = vpack.c.bf16 %v871, %v871
  %v876 = vpack.c.bf16 %v872, %v872
  %v877 = vpack.c.bf16 %v767, %v767
  %v878 = vpack.c.bf16 %v768, %v768
  %v879 = vpack.c.bf16 %v769, %v769
  %v880 = vpack.c.bf16 %v770, %v770
  %881 = vrot.lane.b32.xlu0 %v767, 127
  %v882 = vpop.permute.xlu0 %881
  %883 = vrot.lane.b32.xlu0 %v768, 127
  %v884 = vpop.permute.xlu0 %883
  %885 = vrot.lane.b32.xlu0 %v769, 127
  %v886 = vpop.permute.xlu0 %885
  %887 = vrot.lane.b32.xlu0 %v770, 127
  %v888 = vpop.permute.xlu0 %887
  %v889 = vsel %vm237, %v886, %v888
  %v890 = vsel %vm237, %v884, %v886
  %v891 = vsel %vm237, %v882, %v884
  %v892 = vsel %vm237, %v888, %v882
  %v893 = vmul.f32 %v891, %v248
  %v894 = vmul.f32 %v890, %v252
  %v895 = vmul.f32 %v889, %v256
  %v896 = vmul.f32 %v892, %v260
  %v897 = vpack.c.bf16 %v893, %v893
  %v898 = vpack.c.bf16 %v894, %v894
  %v899 = vpack.c.bf16 %v895, %v895
  %v900 = vpack.c.bf16 %v896, %v896
  %v905 = vrot.slane %v877, 4
  %v906 = vrot.slane %v878, 4
  %v907 = vrot.slane %v879, 4
  %v908 = vrot.slane %v880, 4
  %v911 = vsel %vm163, %v873, %v905
  %v915 = vsel %vm163, %v874, %v906
  %v919 = vsel %vm163, %v875, %v907
  %v923 = vsel %vm163, %v876, %v908
  %s925 = scalar_lea.vmem %s1, 16
  %v926 = vld [vmem:[%s925] sm:$0xf]
  %v928 = vsel %vm299, %v926, 0
  %v931 = vsel %vm163, %v897, 0
  %v934 = vsel %vm163, %v898, 0
  %v937 = vsel %vm163, %v899, 0
  %v940 = vsel %vm163, %v900, 0
  %942 = vmatprep.subr.bf16.mxu0 0
  %943 = vmatpush1.bf16.msra.mxu0 0
  %944 = vmatprep.subr.bf16.mxu0 0
  %945 = vmatpush1.bf16.msra.mxu0 0
  %946 = vmatprep.subr.bf16.mxu0 0
  %947 = vmatpush1.bf16.msra.mxu0 0
  %948 = vmatprep.subr.bf16.mxu0 0
  %949 = vmatpush1.bf16.msra.mxu0 0
  %950 = vmatprep.subr.bf16.mxu0 0
  %951 = vmatpush1.bf16.msra.mxu0 0
  %952 = vmatprep.subr.bf16.mxu0 0
  %953 = vmatpush1.bf16.msra.mxu0 0
  %954 = vmatprep.subr.bf16.mxu0 %v934
  %955 = vmatpush1.bf16.msra.mxu0 %v931
  %956 = vmatprep.subr.bf16.mxu0 %v915
  %957 = vmatpush1.bf16.msra.mxu0 %v911
  %958 = vmatprep.subr.bf16.mxu0 0
  %959 = vmatpush2.bf16.msra.mxu0 0
  %960 = vmatprep.subr.bf16.mxu0 0
  %961 = vmatpush2.bf16.msra.mxu0 0
  %962 = vmatprep.subr.bf16.mxu0 0
  %963 = vmatpush2.bf16.msra.mxu0 0
  %964 = vmatprep.subr.bf16.mxu0 0
  %965 = vmatpush2.bf16.msra.mxu0 0
  %966 = vmatprep.subr.bf16.mxu0 0
  %967 = vmatpush2.bf16.msra.mxu0 0
  %968 = vmatprep.subr.bf16.mxu0 0
  %969 = vmatpush2.bf16.msra.mxu0 0
  %970 = vmatprep.subr.bf16.mxu0 0
  %971 = vmatpush2.bf16.msra.mxu0 0
  %972 = vmatprep.subr.bf16.mxu0 0
  %973 = vmatpush2.bf16.msra.mxu0 0
  %974 = vmatprep.mubr.bf16.mxu0 0
  %975 = vmatmul.mubr.bf16.gmra.mxu0 %v928
  %v976 = vpop.f32.mrf.mxu0
  %v977 = vadd.f32 0.0, %v976
  %v978 = vpop.f32.mrf.mxu0
  %v979 = vadd.f32 0.0, %v978
  %v980 = vpop.f32.mrf.mxu0
  %v981 = vpop.f32.mrf.mxu0
  %982 = vdwg.mxu0
  %983 = vmatprep.subr.bf16.mxu0 0
  %984 = vmatpush1.bf16.msra.mxu0 0
  %985 = vmatprep.subr.bf16.mxu0 0
  %986 = vmatpush1.bf16.msra.mxu0 0
  %987 = vmatprep.subr.bf16.mxu0 0
  %988 = vmatpush1.bf16.msra.mxu0 0
  %989 = vmatprep.subr.bf16.mxu0 0
  %990 = vmatpush1.bf16.msra.mxu0 0
  %991 = vmatprep.subr.bf16.mxu0 0
  %992 = vmatpush1.bf16.msra.mxu0 0
  %993 = vmatprep.subr.bf16.mxu0 0
  %994 = vmatpush1.bf16.msra.mxu0 0
  %995 = vmatprep.subr.bf16.mxu0 %v940
  %996 = vmatpush1.bf16.msra.mxu0 %v937
  %997 = vmatprep.subr.bf16.mxu0 %v923
  %998 = vmatpush1.bf16.msra.mxu0 %v919
  %999 = vmatprep.subr.bf16.mxu0 0
  %1000 = vmatpush2.bf16.msra.mxu0 0
  %1001 = vmatprep.subr.bf16.mxu0 0
  %1002 = vmatpush2.bf16.msra.mxu0 0
  %1003 = vmatprep.subr.bf16.mxu0 0
  %1004 = vmatpush2.bf16.msra.mxu0 0
  %1005 = vmatprep.subr.bf16.mxu0 0
  %1006 = vmatpush2.bf16.msra.mxu0 0
  %1007 = vmatprep.subr.bf16.mxu0 0
  %1008 = vmatpush2.bf16.msra.mxu0 0
  %1009 = vmatprep.subr.bf16.mxu0 0
  %1010 = vmatpush2.bf16.msra.mxu0 0
  %1011 = vmatprep.subr.bf16.mxu0 0
  %1012 = vmatpush2.bf16.msra.mxu0 0
  %1013 = vmatprep.subr.bf16.mxu0 0
  %1014 = vmatpush2.bf16.msra.mxu0 0
  %1015 = vmatprep.mubr.bf16.mxu0 0
  %1016 = vmatmul.mubr.bf16.gmra.mxu0 %v928
  %v1017 = vpop.f32.mrf.mxu0
  %v1018 = vadd.f32 0.0, %v1017
  %v1019 = vpop.f32.mrf.mxu0
  %v1020 = vadd.f32 0.0, %v1019
  %v1021 = vpop.f32.mrf.mxu0
  %v1022 = vpop.f32.mrf.mxu0
  %1023 = vdwg.mxu0
  %v1025 = vsel %vm299, %v856, 0
  %v1028 = vsel %vm163, %v827, 0
  %v1031 = vsel %vm163, %v828, 0
  %v1034 = vsel %vm163, %v829, 0
  %v1037 = vsel %vm163, %v830, 0
  %1039 = vmatprep.subr.bf16.mxu0 0
  %1040 = vmatpush1.bf16.msra.mxu0 0
  %1041 = vmatprep.subr.bf16.mxu0 0
  %1042 = vmatpush1.bf16.msra.mxu0 0
  %1043 = vmatprep.subr.bf16.mxu0 0
  %1044 = vmatpush1.bf16.msra.mxu0 0
  %1045 = vmatprep.subr.bf16.mxu0 0
  %1046 = vmatpush1.bf16.msra.mxu0 0
  %1047 = vmatprep.subr.bf16.mxu0 0
  %1048 = vmatpush1.bf16.msra.mxu0 0
  %1049 = vmatprep.subr.bf16.mxu0 0
  %1050 = vmatpush1.bf16.msra.mxu0 0
  %1051 = vmatprep.subr.bf16.mxu0 %v1031
  %1052 = vmatpush1.bf16.msra.mxu0 %v1028
  %1053 = vmatprep.subr.bf16.mxu0 %v845
  %1054 = vmatpush1.bf16.msra.mxu0 %v841
  %1055 = vmatprep.subr.bf16.mxu0 0
  %1056 = vmatpush2.bf16.msra.mxu0 0
  %1057 = vmatprep.subr.bf16.mxu0 0
  %1058 = vmatpush2.bf16.msra.mxu0 0
  %1059 = vmatprep.subr.bf16.mxu0 0
  %1060 = vmatpush2.bf16.msra.mxu0 0
  %1061 = vmatprep.subr.bf16.mxu0 0
  %1062 = vmatpush2.bf16.msra.mxu0 0
  %1063 = vmatprep.subr.bf16.mxu0 0
  %1064 = vmatpush2.bf16.msra.mxu0 0
  %1065 = vmatprep.subr.bf16.mxu0 0
  %1066 = vmatpush2.bf16.msra.mxu0 0
  %1067 = vmatprep.subr.bf16.mxu0 0
  %1068 = vmatpush2.bf16.msra.mxu0 0
  %1069 = vmatprep.subr.bf16.mxu0 0
  %1070 = vmatpush2.bf16.msra.mxu0 0
  %1071 = vmatprep.mubr.bf16.mxu0 0
  %1072 = vmatmul.mubr.bf16.gmra.mxu0 %v1025
  %v1073 = vpop.f32.mrf.mxu0
  %v1074 = vadd.f32 %v977, %v1073
  %v1075 = vpop.f32.mrf.mxu0
  %v1076 = vadd.f32 %v979, %v1075
  %v1077 = vpop.f32.mrf.mxu0
  %v1078 = vpop.f32.mrf.mxu0
  %1079 = vdwg.mxu0
  %1080 = vmatprep.subr.bf16.mxu0 0
  %1081 = vmatpush1.bf16.msra.mxu0 0
  %1082 = vmatprep.subr.bf16.mxu0 0
  %1083 = vmatpush1.bf16.msra.mxu0 0
  %1084 = vmatprep.subr.bf16.mxu0 0
  %1085 = vmatpush1.bf16.msra.mxu0 0
  %1086 = vmatprep.subr.bf16.mxu0 0
  %1087 = vmatpush1.bf16.msra.mxu0 0
  %1088 = vmatprep.subr.bf16.mxu0 0
  %1089 = vmatpush1.bf16.msra.mxu0 0
  %1090 = vmatprep.subr.bf16.mxu0 0
  %1091 = vmatpush1.bf16.msra.mxu0 0
  %1092 = vmatprep.subr.bf16.mxu0 %v1037
  %1093 = vmatpush1.bf16.msra.mxu0 %v1034
  %1094 = vmatprep.subr.bf16.mxu0 %v853
  %1095 = vmatpush1.bf16.msra.mxu0 %v849
  %1096 = vmatprep.subr.bf16.mxu0 0
  %1097 = vmatpush2.bf16.msra.mxu0 0
  %1098 = vmatprep.subr.bf16.mxu0 0
  %1099 = vmatpush2.bf16.msra.mxu0 0
  %1100 = vmatprep.subr.bf16.mxu0 0
  %1101 = vmatpush2.bf16.msra.mxu0 0
  %1102 = vmatprep.subr.bf16.mxu0 0
  %1103 = vmatpush2.bf16.msra.mxu0 0
  %1104 = vmatprep.subr.bf16.mxu0 0
  %1105 = vmatpush2.bf16.msra.mxu0 0
  %1106 = vmatprep.subr.bf16.mxu0 0
  %1107 = vmatpush2.bf16.msra.mxu0 0
  %1108 = vmatprep.subr.bf16.mxu0 0
  %1109 = vmatpush2.bf16.msra.mxu0 0
  %1110 = vmatprep.subr.bf16.mxu0 0
  %1111 = vmatpush2.bf16.msra.mxu0 0
  %1112 = vmatprep.mubr.bf16.mxu0 0
  %1113 = vmatmul.mubr.bf16.gmra.mxu0 %v1025
  %v1114 = vpop.f32.mrf.mxu0
  %v1115 = vadd.f32 %v1018, %v1114
  %v1116 = vpop.f32.mrf.mxu0
  %v1117 = vadd.f32 %v1020, %v1116
  %v1118 = vpop.f32.mrf.mxu0
  %v1119 = vpop.f32.mrf.mxu0
  %1120 = vdwg.mxu0
  %1121 = vrot.lane.b32.xlu0 %v767, 113
  %v1122 = vpop.permute.xlu0 %1121
  %1123 = vrot.lane.b32.xlu0 %v768, 113
  %v1124 = vpop.permute.xlu0 %1123
  %1125 = vrot.lane.b32.xlu0 %v769, 113
  %v1126 = vpop.permute.xlu0 %1125
  %1127 = vrot.lane.b32.xlu0 %v770, 113
  %v1128 = vpop.permute.xlu0 %1127
  %v1129 = vsel %vm502, %v1126, %v1128
  %v1130 = vsel %vm502, %v1124, %v1126
  %v1131 = vsel %vm502, %v1122, %v1124
  %v1132 = vsel %vm502, %v1128, %v1122
  %v1133 = vmul.f32 %v1131, %v513
  %v1134 = vmul.f32 %v1130, %v517
  %v1135 = vmul.f32 %v1129, %v521
  %v1136 = vmul.f32 %v1132, %v525
  %v1137 = vpack.c.bf16 %v1133, %v1133
  %v1138 = vpack.c.bf16 %v1134, %v1134
  %v1139 = vpack.c.bf16 %v1135, %v1135
  %v1140 = vpack.c.bf16 %v1136, %v1136
  %1141 = vrot.lane.b32.xlu0 %v767, 112
  %v1142 = vpop.permute.xlu0 %1141
  %1143 = vrot.lane.b32.xlu0 %v768, 112
  %v1144 = vpop.permute.xlu0 %1143
  %1145 = vrot.lane.b32.xlu0 %v769, 112
  %v1146 = vpop.permute.xlu0 %1145
  %1147 = vrot.lane.b32.xlu0 %v770, 112
  %v1148 = vpop.permute.xlu0 %1147
  %v1149 = vsel %vm546, %v1146, %v1148
  %v1150 = vsel %vm546, %v1144, %v1146
  %v1151 = vsel %vm546, %v1142, %v1144
  %v1152 = vsel %vm546, %v1148, %v1142
  %v1153 = vmul.f32 %v1151, %v557
  %v1154 = vmul.f32 %v1150, %v561
  %v1155 = vmul.f32 %v1149, %v565
  %v1156 = vmul.f32 %v1152, %v569
  %v1157 = vpack.c.bf16 %v1153, %v1153
  %v1158 = vpack.c.bf16 %v1154, %v1154
  %v1159 = vpack.c.bf16 %v1155, %v1155
  %v1160 = vpack.c.bf16 %v1156, %v1156
  %1161 = vrot.lane.b32.xlu0 %v767, 111
  %v1162 = vpop.permute.xlu0 %1161
  %1163 = vrot.lane.b32.xlu0 %v768, 111
  %v1164 = vpop.permute.xlu0 %1163
  %1165 = vrot.lane.b32.xlu0 %v769, 111
  %v1166 = vpop.permute.xlu0 %1165
  %1167 = vrot.lane.b32.xlu0 %v770, 111
  %v1168 = vpop.permute.xlu0 %1167
  %v1169 = vsel %vm590, %v1166, %v1168
  %v1170 = vsel %vm590, %v1164, %v1166
  %v1171 = vsel %vm590, %v1162, %v1164
  %v1172 = vsel %vm590, %v1168, %v1162
  %v1173 = vmul.f32 %v1171, %v601
  %v1174 = vmul.f32 %v1170, %v605
  %v1175 = vmul.f32 %v1169, %v609
  %v1176 = vmul.f32 %v1172, %v613
  %v1177 = vpack.c.bf16 %v1173, %v1173
  %v1178 = vpack.c.bf16 %v1174, %v1174
  %v1179 = vpack.c.bf16 %v1175, %v1175
  %v1180 = vpack.c.bf16 %v1176, %v1176
  %v1185 = vrot.slane %v1157, 4
  %v1186 = vrot.slane %v1158, 4
  %v1187 = vrot.slane %v1159, 4
  %v1188 = vrot.slane %v1160, 4
  %v1191 = vsel %vm163, %v1137, %v1185
  %v1195 = vsel %vm163, %v1138, %v1186
  %v1199 = vsel %vm163, %v1139, %v1187
  %v1203 = vsel %vm163, %v1140, %v1188
  %s1205 = scalar_lea.vmem %s1, 20
  %v1206 = vld [vmem:[%s1205] sm:$0xf]
  %v1208 = vsel %vm299, %v1206, 0
  %v1211 = vsel %vm163, %v1177, 0
  %v1214 = vsel %vm163, %v1178, 0
  %v1217 = vsel %vm163, %v1179, 0
  %v1220 = vsel %vm163, %v1180, 0
  %1222 = vmatprep.subr.bf16.mxu0 0
  %1223 = vmatpush1.bf16.msra.mxu0 0
  %1224 = vmatprep.subr.bf16.mxu0 0
  %1225 = vmatpush1.bf16.msra.mxu0 0
  %1226 = vmatprep.subr.bf16.mxu0 0
  %1227 = vmatpush1.bf16.msra.mxu0 0
  %1228 = vmatprep.subr.bf16.mxu0 0
  %1229 = vmatpush1.bf16.msra.mxu0 0
  %1230 = vmatprep.subr.bf16.mxu0 0
  %1231 = vmatpush1.bf16.msra.mxu0 0
  %1232 = vmatprep.subr.bf16.mxu0 0
  %1233 = vmatpush1.bf16.msra.mxu0 0
  %1234 = vmatprep.subr.bf16.mxu0 %v1214
  %1235 = vmatpush1.bf16.msra.mxu0 %v1211
  %1236 = vmatprep.subr.bf16.mxu0 %v1195
  %1237 = vmatpush1.bf16.msra.mxu0 %v1191
  %1238 = vmatprep.subr.bf16.mxu0 0
  %1239 = vmatpush2.bf16.msra.mxu0 0
  %1240 = vmatprep.subr.bf16.mxu0 0
  %1241 = vmatpush2.bf16.msra.mxu0 0
  %1242 = vmatprep.subr.bf16.mxu0 0
  %1243 = vmatpush2.bf16.msra.mxu0 0
  %1244 = vmatprep.subr.bf16.mxu0 0
  %1245 = vmatpush2.bf16.msra.mxu0 0
  %1246 = vmatprep.subr.bf16.mxu0 0
  %1247 = vmatpush2.bf16.msra.mxu0 0
  %1248 = vmatprep.subr.bf16.mxu0 0
  %1249 = vmatpush2.bf16.msra.mxu0 0
  %1250 = vmatprep.subr.bf16.mxu0 0
  %1251 = vmatpush2.bf16.msra.mxu0 0
  %1252 = vmatprep.subr.bf16.mxu0 0
  %1253 = vmatpush2.bf16.msra.mxu0 0
  %1254 = vmatprep.mubr.bf16.mxu0 0
  %1255 = vmatmul.mubr.bf16.gmra.mxu0 %v1208
  %v1256 = vpop.f32.mrf.mxu0
  %v1257 = vadd.f32 0.0, %v1256
  %v1258 = vpop.f32.mrf.mxu0
  %v1259 = vadd.f32 0.0, %v1258
  %v1260 = vpop.f32.mrf.mxu0
  %v1261 = vpop.f32.mrf.mxu0
  %1262 = vdwg.mxu0
  %1263 = vmatprep.subr.bf16.mxu0 0
  %1264 = vmatpush1.bf16.msra.mxu0 0
  %1265 = vmatprep.subr.bf16.mxu0 0
  %1266 = vmatpush1.bf16.msra.mxu0 0
  %1267 = vmatprep.subr.bf16.mxu0 0
  %1268 = vmatpush1.bf16.msra.mxu0 0
  %1269 = vmatprep.subr.bf16.mxu0 0
  %1270 = vmatpush1.bf16.msra.mxu0 0
  %1271 = vmatprep.subr.bf16.mxu0 0
  %1272 = vmatpush1.bf16.msra.mxu0 0
  %1273 = vmatprep.subr.bf16.mxu0 0
  %1274 = vmatpush1.bf16.msra.mxu0 0
  %1275 = vmatprep.subr.bf16.mxu0 %v1220
  %1276 = vmatpush1.bf16.msra.mxu0 %v1217
  %1277 = vmatprep.subr.bf16.mxu0 %v1203
  %1278 = vmatpush1.bf16.msra.mxu0 %v1199
  %1279 = vmatprep.subr.bf16.mxu0 0
  %1280 = vmatpush2.bf16.msra.mxu0 0
  %1281 = vmatprep.subr.bf16.mxu0 0
  %1282 = vmatpush2.bf16.msra.mxu0 0
  %1283 = vmatprep.subr.bf16.mxu0 0
  %1284 = vmatpush2.bf16.msra.mxu0 0
  %1285 = vmatprep.subr.bf16.mxu0 0
  %1286 = vmatpush2.bf16.msra.mxu0 0
  %1287 = vmatprep.subr.bf16.mxu0 0
  %1288 = vmatpush2.bf16.msra.mxu0 0
  %1289 = vmatprep.subr.bf16.mxu0 0
  %1290 = vmatpush2.bf16.msra.mxu0 0
  %1291 = vmatprep.subr.bf16.mxu0 0
  %1292 = vmatpush2.bf16.msra.mxu0 0
  %1293 = vmatprep.subr.bf16.mxu0 0
  %1294 = vmatpush2.bf16.msra.mxu0 0
  %1295 = vmatprep.mubr.bf16.mxu0 0
  %1296 = vmatmul.mubr.bf16.gmra.mxu0 %v1208
  %v1297 = vpop.f32.mrf.mxu0
  %v1298 = vadd.f32 0.0, %v1297
  %v1299 = vpop.f32.mrf.mxu0
  %v1300 = vadd.f32 0.0, %v1299
  %v1301 = vpop.f32.mrf.mxu0
  %v1302 = vpop.f32.mrf.mxu0
  %1303 = vdwg.mxu0
  %v1304 = vadd.f32 %v1074, %v1257
  %v1305 = vadd.f32 %v1076, %v1259
  %v1306 = vadd.f32 %v1115, %v1298
  %v1307 = vadd.f32 %v1117, %v1300
  %s1308 = scalar_lea.vmem %s2, 8
  %v1309 = vld [vmem:[%s1308] sm:$0xff]
  %1311 = vset.pattern.permute.xlu0 0
  %1312 = vperm.xlu0 %1311, %v1309
  %v1313 = vpop.permute.xlu0 %1312
  %v1315 = vadd.f32 %v1304, %v1313
  %v1316 = vadd.f32 %v1305, %v1313
  %v1317 = vadd.f32 %v1306, %v1313
  %v1318 = vadd.f32 %v1307, %v1313
  %v1319 = vmul.f32 %v1315, 0.01
  %v1320 = vmul.f32 %v1316, 0.01
  %v1321 = vmul.f32 %v1317, 0.01
  %v1322 = vmul.f32 %v1318, 0.01
  %v1323 = vmax.f32 %v1315, %v1319
  %v1324 = vmax.f32 %v1316, %v1320
  %v1325 = vmax.f32 %v1317, %v1321
  %v1326 = vmax.f32 %v1318, %v1322
  %1327 = vrot.lane.b32.xlu0 %v1323, 17
  %v1328 = vpop.permute.xlu0 %1327
  %1329 = vrot.lane.b32.xlu0 %v1324, 17
  %v1330 = vpop.permute.xlu0 %1329
  %1331 = vrot.lane.b32.xlu0 %v1325, 17
  %v1332 = vpop.permute.xlu0 %1331
  %1333 = vrot.lane.b32.xlu0 %v1326, 17
  %v1334 = vpop.permute.xlu0 %1333
  %v1335 = vsel %vm32, %v1332, %v1334
  %v1336 = vsel %vm32, %v1330, %v1332
  %v1337 = vsel %vm32, %v1328, %v1330
  %v1338 = vsel %vm32, %v1334, %v1328
  %v1339 = vmul.f32 %v1338, %v42
  %v1340 = vmul.f32 %v1337, %v46
  %v1341 = vmul.f32 %v1336, %v50
  %v1342 = vmul.f32 %v1335, %v54
  %v1343 = vpack.c.bf16 %v783, %v1339
  %v1344 = vpack.c.bf16 %v784, %v1340
  %v1345 = vpack.c.bf16 %v785, %v1341
  %v1346 = vpack.c.bf16 %v786, %v1342
  %1347 = vrot.lane.b32.xlu0 %v1323, 16
  %v1348 = vpop.permute.xlu0 %1347
  %1349 = vrot.lane.b32.xlu0 %v1324, 16
  %v1350 = vpop.permute.xlu0 %1349
  %1351 = vrot.lane.b32.xlu0 %v1325, 16
  %v1352 = vpop.permute.xlu0 %1351
  %1353 = vrot.lane.b32.xlu0 %v1326, 16
  %v1354 = vpop.permute.xlu0 %1353
  %v1355 = vsel %vm75, %v1352, %v1354
  %v1356 = vsel %vm75, %v1350, %v1352
  %v1357 = vsel %vm75, %v1348, %v1350
  %v1358 = vsel %vm75, %v1354, %v1348
  %v1359 = vmul.f32 %v1358, %v86
  %v1360 = vmul.f32 %v1357, %v90
  %v1361 = vmul.f32 %v1356, %v94
  %v1362 = vmul.f32 %v1355, %v98
  %v1363 = vpack.c.bf16 %v803, %v1359
  %v1364 = vpack.c.bf16 %v804, %v1360
  %v1365 = vpack.c.bf16 %v805, %v1361
  %v1366 = vpack.c.bf16 %v806, %v1362
  %1367 = vrot.lane.b32.xlu0 %v1323, 15
  %v1368 = vpop.permute.xlu0 %1367
  %1369 = vrot.lane.b32.xlu0 %v1324, 15
  %v1370 = vpop.permute.xlu0 %1369
  %1371 = vrot.lane.b32.xlu0 %v1325, 15
  %v1372 = vpop.permute.xlu0 %1371
  %1373 = vrot.lane.b32.xlu0 %v1326, 15
  %v1374 = vpop.permute.xlu0 %1373
  %v1375 = vsel %vm119, %v1372, %v1374
  %v1376 = vsel %vm119, %v1370, %v1372
  %v1377 = vsel %vm119, %v1368, %v1370
  %v1378 = vsel %vm119, %v1374, %v1368
  %v1379 = vmul.f32 %v1378, %v130
  %v1380 = vmul.f32 %v1377, %v134
  %v1381 = vmul.f32 %v1376, %v138
  %v1382 = vmul.f32 %v1375, %v142
  %v1383 = vpack.c.bf16 %v823, %v1379
  %v1384 = vpack.c.bf16 %v824, %v1380
  %v1385 = vpack.c.bf16 %v825, %v1381
  %v1386 = vpack.c.bf16 %v826, %v1382
  %s1387 = scalar_lea.vmem %s1, 24
  %v1388 = vld [vmem:[%s1387] sm:$0xf]
  %1389 = vrot.lane.b32.xlu0 %v1323, 1
  %v1390 = vpop.permute.xlu0 %1389
  %1391 = vrot.lane.b32.xlu0 %v1324, 1
  %v1392 = vpop.permute.xlu0 %1391
  %1393 = vrot.lane.b32.xlu0 %v1325, 1
  %v1394 = vpop.permute.xlu0 %1393
  %1395 = vrot.lane.b32.xlu0 %v1326, 1
  %v1396 = vpop.permute.xlu0 %1395
  %v1397 = vsel %vm189, %v1394, %v1396
  %v1398 = vsel %vm189, %v1392, %v1394
  %v1399 = vsel %vm189, %v1390, %v1392
  %v1400 = vsel %vm189, %v1396, %v1390
  %v1401 = vmul.f32 %v1400, %v200
  %v1402 = vmul.f32 %v1399, %v204
  %v1403 = vmul.f32 %v1398, %v208
  %v1404 = vmul.f32 %v1397, %v212
  %v1405 = vpack.c.bf16 %v869, %v1401
  %v1406 = vpack.c.bf16 %v870, %v1402
  %v1407 = vpack.c.bf16 %v871, %v1403
  %v1408 = vpack.c.bf16 %v872, %v1404
  %v1409 = vpack.c.bf16 %v767, %v1323
  %v1410 = vpack.c.bf16 %v768, %v1324
  %v1411 = vpack.c.bf16 %v769, %v1325
  %v1412 = vpack.c.bf16 %v770, %v1326
  %1413 = vrot.lane.b32.xlu0 %v1323, 127
  %v1414 = vpop.permute.xlu0 %1413
  %1415 = vrot.lane.b32.xlu0 %v1324, 127
  %v1416 = vpop.permute.xlu0 %1415
  %1417 = vrot.lane.b32.xlu0 %v1325, 127
  %v1418 = vpop.permute.xlu0 %1417
  %1419 = vrot.lane.b32.xlu0 %v1326, 127
  %v1420 = vpop.permute.xlu0 %1419
  %v1421 = vsel %vm237, %v1418, %v1420
  %v1422 = vsel %vm237, %v1416, %v1418
  %v1423 = vsel %vm237, %v1414, %v1416
  %v1424 = vsel %vm237, %v1420, %v1414
  %v1425 = vmul.f32 %v1423, %v248
  %v1426 = vmul.f32 %v1422, %v252
  %v1427 = vmul.f32 %v1421, %v256
  %v1428 = vmul.f32 %v1424, %v260
  %v1429 = vpack.c.bf16 %v893, %v1425
  %v1430 = vpack.c.bf16 %v894, %v1426
  %v1431 = vpack.c.bf16 %v895, %v1427
  %v1432 = vpack.c.bf16 %v896, %v1428
  %s1433 = scalar_lea.vmem %s1, 28
  %v1434 = vld [vmem:[%s1433] sm:$0xf]
  %vm1435 = vcmask 392192
  %v1437 = vsel %vm1435, %v1434, 0
  %1439 = vmatprep.subr.bf16.mxu0 0
  %1440 = vmatpush1.bf16.msra.mxu0 0
  %1441 = vmatprep.subr.bf16.mxu0 0
  %1442 = vmatpush1.bf16.msra.mxu0 0
  %1443 = vmatprep.subr.bf16.mxu0 0
  %1444 = vmatpush1.bf16.msra.mxu0 0
  %1445 = vmatprep.subr.bf16.mxu0 0
  %1446 = vmatpush1.bf16.msra.mxu0 0
  %1447 = vmatprep.subr.bf16.mxu0 0
  %1448 = vmatpush1.bf16.msra.mxu0 0
  %1449 = vmatprep.subr.bf16.mxu0 %v1430
  %1450 = vmatpush1.bf16.msra.mxu0 %v1429
  %1451 = vmatprep.subr.bf16.mxu0 %v1410
  %1452 = vmatpush1.bf16.msra.mxu0 %v1409
  %1453 = vmatprep.subr.bf16.mxu0 %v1406
  %1454 = vmatpush1.bf16.msra.mxu0 %v1405
  %1455 = vmatprep.subr.bf16.mxu0 0
  %1456 = vmatpush2.bf16.msra.mxu0 0
  %1457 = vmatprep.subr.bf16.mxu0 0
  %1458 = vmatpush2.bf16.msra.mxu0 0
  %1459 = vmatprep.subr.bf16.mxu0 0
  %1460 = vmatpush2.bf16.msra.mxu0 0
  %1461 = vmatprep.subr.bf16.mxu0 0
  %1462 = vmatpush2.bf16.msra.mxu0 0
  %1463 = vmatprep.subr.bf16.mxu0 0
  %1464 = vmatpush2.bf16.msra.mxu0 0
  %1465 = vmatprep.subr.bf16.mxu0 0
  %1466 = vmatpush2.bf16.msra.mxu0 0
  %1467 = vmatprep.subr.bf16.mxu0 0
  %1468 = vmatpush2.bf16.msra.mxu0 0
  %1469 = vmatprep.subr.bf16.mxu0 0
  %1470 = vmatpush2.bf16.msra.mxu0 0
  %1471 = vmatprep.mubr.bf16.mxu0 0
  %1472 = vmatmul.mubr.bf16.gmra.mxu0 %v1437
  %v1473 = vpop.f32.mrf.mxu0
  %v1474 = vadd.f32 0.0, %v1473
  %v1475 = vpop.f32.mrf.mxu0
  %v1476 = vadd.f32 0.0, %v1475
  %v1477 = vpop.f32.mrf.mxu0
  %v1478 = vpop.f32.mrf.mxu0
  %1479 = vdwg.mxu0
  %1480 = vmatprep.subr.bf16.mxu0 0
  %1481 = vmatpush1.bf16.msra.mxu0 0
  %1482 = vmatprep.subr.bf16.mxu0 0
  %1483 = vmatpush1.bf16.msra.mxu0 0
  %1484 = vmatprep.subr.bf16.mxu0 0
  %1485 = vmatpush1.bf16.msra.mxu0 0
  %1486 = vmatprep.subr.bf16.mxu0 0
  %1487 = vmatpush1.bf16.msra.mxu0 0
  %1488 = vmatprep.subr.bf16.mxu0 0
  %1489 = vmatpush1.bf16.msra.mxu0 0
  %1490 = vmatprep.subr.bf16.mxu0 %v1432
  %1491 = vmatpush1.bf16.msra.mxu0 %v1431
  %1492 = vmatprep.subr.bf16.mxu0 %v1412
  %1493 = vmatpush1.bf16.msra.mxu0 %v1411
  %1494 = vmatprep.subr.bf16.mxu0 %v1408
  %1495 = vmatpush1.bf16.msra.mxu0 %v1407
  %1496 = vmatprep.subr.bf16.mxu0 0
  %1497 = vmatpush2.bf16.msra.mxu0 0
  %1498 = vmatprep.subr.bf16.mxu0 0
  %1499 = vmatpush2.bf16.msra.mxu0 0
  %1500 = vmatprep.subr.bf16.mxu0 0
  %1501 = vmatpush2.bf16.msra.mxu0 0
  %1502 = vmatprep.subr.bf16.mxu0 0
  %1503 = vmatpush2.bf16.msra.mxu0 0
  %1504 = vmatprep.subr.bf16.mxu0 0
  %1505 = vmatpush2.bf16.msra.mxu0 0
  %1506 = vmatprep.subr.bf16.mxu0 0
  %1507 = vmatpush2.bf16.msra.mxu0 0
  %1508 = vmatprep.subr.bf16.mxu0 0
  %1509 = vmatpush2.bf16.msra.mxu0 0
  %1510 = vmatprep.subr.bf16.mxu0 0
  %1511 = vmatpush2.bf16.msra.mxu0 0
  %1512 = vmatprep.mubr.bf16.mxu0 0
  %1513 = vmatmul.mubr.bf16.gmra.mxu0 %v1437
  %v1514 = vpop.f32.mrf.mxu0
  %v1515 = vadd.f32 0.0, %v1514
  %v1516 = vpop.f32.mrf.mxu0
  %v1517 = vadd.f32 0.0, %v1516
  %v1518 = vpop.f32.mrf.mxu0
  %v1519 = vpop.f32.mrf.mxu0
  %1520 = vdwg.mxu0
  %v1522 = vsel %vm1435, %v1388, 0
  %1524 = vmatprep.subr.bf16.mxu0 0
  %1525 = vmatpush1.bf16.msra.mxu0 0
  %1526 = vmatprep.subr.bf16.mxu0 0
  %1527 = vmatpush1.bf16.msra.mxu0 0
  %1528 = vmatprep.subr.bf16.mxu0 0
  %1529 = vmatpush1.bf16.msra.mxu0 0
  %1530 = vmatprep.subr.bf16.mxu0 0
  %1531 = vmatpush1.bf16.msra.mxu0 0
  %1532 = vmatprep.subr.bf16.mxu0 0
  %1533 = vmatpush1.bf16.msra.mxu0 0
  %1534 = vmatprep.subr.bf16.mxu0 %v1384
  %1535 = vmatpush1.bf16.msra.mxu0 %v1383
  %1536 = vmatprep.subr.bf16.mxu0 %v1364
  %1537 = vmatpush1.bf16.msra.mxu0 %v1363
  %1538 = vmatprep.subr.bf16.mxu0 %v1344
  %1539 = vmatpush1.bf16.msra.mxu0 %v1343
  %1540 = vmatprep.subr.bf16.mxu0 0
  %1541 = vmatpush2.bf16.msra.mxu0 0
  %1542 = vmatprep.subr.bf16.mxu0 0
  %1543 = vmatpush2.bf16.msra.mxu0 0
  %1544 = vmatprep.subr.bf16.mxu0 0
  %1545 = vmatpush2.bf16.msra.mxu0 0
  %1546 = vmatprep.subr.bf16.mxu0 0
  %1547 = vmatpush2.bf16.msra.mxu0 0
  %1548 = vmatprep.subr.bf16.mxu0 0
  %1549 = vmatpush2.bf16.msra.mxu0 0
  %1550 = vmatprep.subr.bf16.mxu0 0
  %1551 = vmatpush2.bf16.msra.mxu0 0
  %1552 = vmatprep.subr.bf16.mxu0 0
  %1553 = vmatpush2.bf16.msra.mxu0 0
  %1554 = vmatprep.subr.bf16.mxu0 0
  %1555 = vmatpush2.bf16.msra.mxu0 0
  %1556 = vmatprep.mubr.bf16.mxu0 0
  %1557 = vmatmul.mubr.bf16.gmra.mxu0 %v1522
  %v1558 = vpop.f32.mrf.mxu0
  %v1559 = vadd.f32 %v1474, %v1558
  %v1560 = vpop.f32.mrf.mxu0
  %v1561 = vadd.f32 %v1476, %v1560
  %v1562 = vpop.f32.mrf.mxu0
  %v1563 = vpop.f32.mrf.mxu0
  %1564 = vdwg.mxu0
  %1565 = vmatprep.subr.bf16.mxu0 0
  %1566 = vmatpush1.bf16.msra.mxu0 0
  %1567 = vmatprep.subr.bf16.mxu0 0
  %1568 = vmatpush1.bf16.msra.mxu0 0
  %1569 = vmatprep.subr.bf16.mxu0 0
  %1570 = vmatpush1.bf16.msra.mxu0 0
  %1571 = vmatprep.subr.bf16.mxu0 0
  %1572 = vmatpush1.bf16.msra.mxu0 0
  %1573 = vmatprep.subr.bf16.mxu0 0
  %1574 = vmatpush1.bf16.msra.mxu0 0
  %1575 = vmatprep.subr.bf16.mxu0 %v1386
  %1576 = vmatpush1.bf16.msra.mxu0 %v1385
  %1577 = vmatprep.subr.bf16.mxu0 %v1366
  %1578 = vmatpush1.bf16.msra.mxu0 %v1365
  %1579 = vmatprep.subr.bf16.mxu0 %v1346
  %1580 = vmatpush1.bf16.msra.mxu0 %v1345
  %1581 = vmatprep.subr.bf16.mxu0 0
  %1582 = vmatpush2.bf16.msra.mxu0 0
  %1583 = vmatprep.subr.bf16.mxu0 0
  %1584 = vmatpush2.bf16.msra.mxu0 0
  %1585 = vmatprep.subr.bf16.mxu0 0
  %1586 = vmatpush2.bf16.msra.mxu0 0
  %1587 = vmatprep.subr.bf16.mxu0 0
  %1588 = vmatpush2.bf16.msra.mxu0 0
  %1589 = vmatprep.subr.bf16.mxu0 0
  %1590 = vmatpush2.bf16.msra.mxu0 0
  %1591 = vmatprep.subr.bf16.mxu0 0
  %1592 = vmatpush2.bf16.msra.mxu0 0
  %1593 = vmatprep.subr.bf16.mxu0 0
  %1594 = vmatpush2.bf16.msra.mxu0 0
  %1595 = vmatprep.subr.bf16.mxu0 0
  %1596 = vmatpush2.bf16.msra.mxu0 0
  %1597 = vmatprep.mubr.bf16.mxu0 0
  %1598 = vmatmul.mubr.bf16.gmra.mxu0 %v1522
  %v1599 = vpop.f32.mrf.mxu0
  %v1600 = vadd.f32 %v1515, %v1599
  %v1601 = vpop.f32.mrf.mxu0
  %v1602 = vadd.f32 %v1517, %v1601
  %v1603 = vpop.f32.mrf.mxu0
  %v1604 = vpop.f32.mrf.mxu0
  %1605 = vdwg.mxu0
  %1606 = vrot.lane.b32.xlu0 %v1323, 113
  %v1607 = vpop.permute.xlu0 %1606
  %1608 = vrot.lane.b32.xlu0 %v1324, 113
  %v1609 = vpop.permute.xlu0 %1608
  %1610 = vrot.lane.b32.xlu0 %v1325, 113
  %v1611 = vpop.permute.xlu0 %1610
  %1612 = vrot.lane.b32.xlu0 %v1326, 113
  %v1613 = vpop.permute.xlu0 %1612
  %v1614 = vsel %vm502, %v1611, %v1613
  %v1615 = vsel %vm502, %v1609, %v1611
  %v1616 = vsel %vm502, %v1607, %v1609
  %v1617 = vsel %vm502, %v1613, %v1607
  %v1618 = vmul.f32 %v1616, %v513
  %v1619 = vmul.f32 %v1615, %v517
  %v1620 = vmul.f32 %v1614, %v521
  %v1621 = vmul.f32 %v1617, %v525
  %v1622 = vpack.c.bf16 %v1133, %v1618
  %v1623 = vpack.c.bf16 %v1134, %v1619
  %v1624 = vpack.c.bf16 %v1135, %v1620
  %v1625 = vpack.c.bf16 %v1136, %v1621
  %1626 = vrot.lane.b32.xlu0 %v1323, 112
  %v1627 = vpop.permute.xlu0 %1626
  %1628 = vrot.lane.b32.xlu0 %v1324, 112
  %v1629 = vpop.permute.xlu0 %1628
  %1630 = vrot.lane.b32.xlu0 %v1325, 112
  %v1631 = vpop.permute.xlu0 %1630
  %1632 = vrot.lane.b32.xlu0 %v1326, 112
  %v1633 = vpop.permute.xlu0 %1632
  %v1634 = vsel %vm546, %v1631, %v1633
  %v1635 = vsel %vm546, %v1629, %v1631
  %v1636 = vsel %vm546, %v1627, %v1629
  %v1637 = vsel %vm546, %v1633, %v1627
  %v1638 = vmul.f32 %v1636, %v557
  %v1639 = vmul.f32 %v1635, %v561
  %v1640 = vmul.f32 %v1634, %v565
  %v1641 = vmul.f32 %v1637, %v569
  %v1642 = vpack.c.bf16 %v1153, %v1638
  %v1643 = vpack.c.bf16 %v1154, %v1639
  %v1644 = vpack.c.bf16 %v1155, %v1640
  %v1645 = vpack.c.bf16 %v1156, %v1641
  %1646 = vrot.lane.b32.xlu0 %v1323, 111
  %v1647 = vpop.permute.xlu0 %1646
  %1648 = vrot.lane.b32.xlu0 %v1324, 111
  %v1649 = vpop.permute.xlu0 %1648
  %1650 = vrot.lane.b32.xlu0 %v1325, 111
  %v1651 = vpop.permute.xlu0 %1650
  %1652 = vrot.lane.b32.xlu0 %v1326, 111
  %v1653 = vpop.permute.xlu0 %1652
  %v1654 = vsel %vm590, %v1651, %v1653
  %v1655 = vsel %vm590, %v1649, %v1651
  %v1656 = vsel %vm590, %v1647, %v1649
  %v1657 = vsel %vm590, %v1653, %v1647
  %v1658 = vmul.f32 %v1656, %v601
  %v1659 = vmul.f32 %v1655, %v605
  %v1660 = vmul.f32 %v1654, %v609
  %v1661 = vmul.f32 %v1657, %v613
  %v1662 = vpack.c.bf16 %v1173, %v1658
  %v1663 = vpack.c.bf16 %v1174, %v1659
  %v1664 = vpack.c.bf16 %v1175, %v1660
  %v1665 = vpack.c.bf16 %v1176, %v1661
  %s1666 = scalar_lea.vmem %s1, 32
  %v1667 = vld [vmem:[%s1666] sm:$0xf]
  %v1669 = vsel %vm1435, %v1667, 0
  %1671 = vmatprep.subr.bf16.mxu0 0
  %1672 = vmatpush1.bf16.msra.mxu0 0
  %1673 = vmatprep.subr.bf16.mxu0 0
  %1674 = vmatpush1.bf16.msra.mxu0 0
  %1675 = vmatprep.subr.bf16.mxu0 0
  %1676 = vmatpush1.bf16.msra.mxu0 0
  %1677 = vmatprep.subr.bf16.mxu0 0
  %1678 = vmatpush1.bf16.msra.mxu0 0
  %1679 = vmatprep.subr.bf16.mxu0 0
  %1680 = vmatpush1.bf16.msra.mxu0 0
  %1681 = vmatprep.subr.bf16.mxu0 %v1663
  %1682 = vmatpush1.bf16.msra.mxu0 %v1662
  %1683 = vmatprep.subr.bf16.mxu0 %v1643
  %1684 = vmatpush1.bf16.msra.mxu0 %v1642
  %1685 = vmatprep.subr.bf16.mxu0 %v1623
  %1686 = vmatpush1.bf16.msra.mxu0 %v1622
  %1687 = vmatprep.subr.bf16.mxu0 0
  %1688 = vmatpush2.bf16.msra.mxu0 0
  %1689 = vmatprep.subr.bf16.mxu0 0
  %1690 = vmatpush2.bf16.msra.mxu0 0
  %1691 = vmatprep.subr.bf16.mxu0 0
  %1692 = vmatpush2.bf16.msra.mxu0 0
  %1693 = vmatprep.subr.bf16.mxu0 0
  %1694 = vmatpush2.bf16.msra.mxu0 0
  %1695 = vmatprep.subr.bf16.mxu0 0
  %1696 = vmatpush2.bf16.msra.mxu0 0
  %1697 = vmatprep.subr.bf16.mxu0 0
  %1698 = vmatpush2.bf16.msra.mxu0 0
  %1699 = vmatprep.subr.bf16.mxu0 0
  %1700 = vmatpush2.bf16.msra.mxu0 0
  %1701 = vmatprep.subr.bf16.mxu0 0
  %1702 = vmatpush2.bf16.msra.mxu0 0
  %1703 = vmatprep.mubr.bf16.mxu0 0
  %1704 = vmatmul.mubr.bf16.gmra.mxu0 %v1669
  %v1705 = vpop.f32.mrf.mxu0
  %v1706 = vadd.f32 0.0, %v1705
  %v1707 = vpop.f32.mrf.mxu0
  %v1708 = vadd.f32 0.0, %v1707
  %v1709 = vpop.f32.mrf.mxu0
  %v1710 = vpop.f32.mrf.mxu0
  %1711 = vdwg.mxu0
  %1712 = vmatprep.subr.bf16.mxu0 0
  %1713 = vmatpush1.bf16.msra.mxu0 0
  %1714 = vmatprep.subr.bf16.mxu0 0
  %1715 = vmatpush1.bf16.msra.mxu0 0
  %1716 = vmatprep.subr.bf16.mxu0 0
  %1717 = vmatpush1.bf16.msra.mxu0 0
  %1718 = vmatprep.subr.bf16.mxu0 0
  %1719 = vmatpush1.bf16.msra.mxu0 0
  %1720 = vmatprep.subr.bf16.mxu0 0
  %1721 = vmatpush1.bf16.msra.mxu0 0
  %1722 = vmatprep.subr.bf16.mxu0 %v1665
  %1723 = vmatpush1.bf16.msra.mxu0 %v1664
  %1724 = vmatprep.subr.bf16.mxu0 %v1645
  %1725 = vmatpush1.bf16.msra.mxu0 %v1644
  %1726 = vmatprep.subr.bf16.mxu0 %v1625
  %1727 = vmatpush1.bf16.msra.mxu0 %v1624
  %1728 = vmatprep.subr.bf16.mxu0 0
  %1729 = vmatpush2.bf16.msra.mxu0 0
  %1730 = vmatprep.subr.bf16.mxu0 0
  %1731 = vmatpush2.bf16.msra.mxu0 0
  %1732 = vmatprep.subr.bf16.mxu0 0
  %1733 = vmatpush2.bf16.msra.mxu0 0
  %1734 = vmatprep.subr.bf16.mxu0 0
  %1735 = vmatpush2.bf16.msra.mxu0 0
  %1736 = vmatprep.subr.bf16.mxu0 0
  %1737 = vmatpush2.bf16.msra.mxu0 0
  %1738 = vmatprep.subr.bf16.mxu0 0
  %1739 = vmatpush2.bf16.msra.mxu0 0
  %1740 = vmatprep.subr.bf16.mxu0 0
  %1741 = vmatpush2.bf16.msra.mxu0 0
  %1742 = vmatprep.subr.bf16.mxu0 0
  %1743 = vmatpush2.bf16.msra.mxu0 0
  %1744 = vmatprep.mubr.bf16.mxu0 0
  %1745 = vmatmul.mubr.bf16.gmra.mxu0 %v1669
  %v1746 = vpop.f32.mrf.mxu0
  %v1747 = vadd.f32 0.0, %v1746
  %v1748 = vpop.f32.mrf.mxu0
  %v1749 = vadd.f32 0.0, %v1748
  %v1750 = vpop.f32.mrf.mxu0
  %v1751 = vpop.f32.mrf.mxu0
  %1752 = vdwg.mxu0
  %v1753 = vadd.f32 %v1559, %v1706
  %v1754 = vadd.f32 %v1561, %v1708
  %v1755 = vadd.f32 %v1600, %v1747
  %v1756 = vadd.f32 %v1602, %v1749
  %s1757 = scalar_lea.vmem %s2, 16
  %v1758 = vld [vmem:[%s1757] sm:$0xff]
  %1760 = vset.pattern.permute.xlu0 0
  %1761 = vperm.xlu0 %1760, %v1758
  %v1762 = vpop.permute.xlu0 %1761
  %v1764 = vadd.f32 %v1753, %v1762
  %v1765 = vadd.f32 %v1754, %v1762
  %v1766 = vadd.f32 %v1755, %v1762
  %v1767 = vadd.f32 %v1756, %v1762
  %1768 = vst [vmem:[%s4] sm:$0xff] %v1764
  %1769 = vst [vmem:[%s4 + $0x8] sm:$0xff] %v1765
  %s1770 = scalar_lea.vmem %s4, 16
  %1771 = vst [vmem:[%s1770] sm:$0xff] %v1766
  %1772 = vst [vmem:[%s1770 + $0x8] sm:$0xff] %v1767
  // Predicated region
  $region18: #{_lambda_.1} parent=0 // pred_check
    _
  $region19: #{_lambda_.1} parent=0 // pred_check_branch
    %1774 = sbr.rel (0) target = $region21
  $region20: #{_lambda_.1} parent=0 // pred_region
    _
  $region21: #{_lambda_.1} parent=0 // pred_fallthru
    _
  // Predicated region
  $region22: #{_lambda_.1} parent=0 // pred_check
    _
  $region23: #{_lambda_.1} parent=0 // pred_check_branch
    %1776 = sbr.rel (0) target = $region25
  $region24: #{_lambda_.1} parent=0 // pred_region
    _
  $region25: #{_lambda_.1} parent=0 // pred_fallthru
    _

</llo_original>
